<compile_context>
chip_gen: v5e
topology: v5e:2x2
jax: 0.10.0
libtpu: 0.0.40
codegen_flags: <defaults>
</compile_context>

<pallas_src>
import functools
import math

import jax
import jax.numpy as jnp
from jax import lax
from jax.experimental import pallas as pl
from jax.experimental.pallas import tpu as pltpu


def _round_up(x, m):
    return (x + m - 1) // m * m


def _choose_h_tile(h_out, w_padded, w_out, c_in_pad, c_out_pad, kh, stride,
                   dilation, in_itemsize, out_itemsize,
                   budget_bytes=20 * 1024 * 1024):
    """Pick an output-row tile TH that keeps per-step VMEM bounded (v7x-safe)."""
    halo_rows = dilation * (kh - 1)
    per_row = (2 * stride * w_padded * c_in_pad * in_itemsize    # input dbl buffer
               + 2 * w_out * c_out_pad * out_itemsize            # output dbl buffer
               + w_out * (c_in_pad + c_out_pad) * 4)             # f32 acc / y values
    fixed = 2 * (halo_rows + 1) * w_padded * c_in_pad * in_itemsize
    th = max(1, (budget_bytes - fixed) // max(per_row, 1))
    th = int(min(th, h_out, 128))
    if th >= 8:
        th = (th // 8) * 8        # keep reshapes / sublanes aligned
    return max(1, th)


def _atrous_sep_conv_kernel(x_hbm, dww_ref, pww_ref, pwb_ref, o_ref,
                            xbuf, sem,
                            *, kh, kw, stride, dilation, th, th_in, w_out):
    b = pl.program_id(0)
    t = pl.program_id(1)
    nt = pl.num_programs(1)
    slot = t % 2
    rows_per_tile = th * stride

    def _start_fetch(tile_idx, s):
        pltpu.make_async_copy(
            x_hbm.at[b, pl.ds(tile_idx * rows_per_tile, th_in), :, :],
            xbuf.at[s], sem.at[s]).start()

    # Prime the pipeline at the first tile of every image.
    @pl.when(t == 0)
    def _():
        _start_fetch(t, slot)

    # Wait for the current tile's DMA (src argument only provides shape/size
    # for the semaphore wait; it matches the shape used in _start_fetch).
    pltpu.make_async_copy(x_hbm.at[b, pl.ds(0, th_in), :, :],
                          xbuf.at[slot], sem.at[slot]).wait()

    # Prefetch the next tile of this image; it lands while we compute.
    @pl.when(t + 1 < nt)
    def _():
        _start_fetch(t + 1, (t + 1) % 2)

    # ---- depthwise (atrous) convolution: VPU multiply-accumulate, f32 acc ----
    w_dw = dww_ref[...]                       # (kh, kw, Cin_pad), f32 (hoisted)
    c_in_pad = w_dw.shape[-1]
    acc = jnp.zeros((th, w_out, c_in_pad), jnp.float32)
    for i in range(kh):                       # static unroll: kh*kw taps
        for j in range(kw):
            h0 = i * dilation
            w0 = j * dilation
            if stride == 1:
                hs = pl.ds(h0, th)
                ws = pl.ds(w0, w_out)
            else:
                hs = pl.ds(h0, th, stride=stride)
                ws = pl.ds(w0, w_out, stride=stride)
            # Read the tap window straight from the VMEM ref (no value slices).
            patch = xbuf[slot, hs, ws, :].astype(jnp.float32)
            acc = acc + patch * w_dw[i, j]

    # ---- pointwise 1x1 convolution: one lane-dense MXU matmul ----
    w_pw = pww_ref[...]                       # (Cin_pad, Cout_pad)
    lhs = acc.reshape(th * w_out, c_in_pad).astype(w_pw.dtype)
    y = jnp.dot(lhs, w_pw, preferred_element_type=jnp.float32)
    y = y + pwb_ref[...]                      # fused (b_dw @ w_pw + b_pw), f32
    o_ref[...] = y.reshape(th, w_out, -1).astype(o_ref.dtype)


def atrous_separable_conv(x_nchw, w_dw, b_dw, w_pw, b_pw,
                          *, stride=1, padding=0, dilation=1):
    """x_nchw: (N, Cin, H, W); w_dw: (KH, KW, Cin); b_dw: (Cin,);
       w_pw: (Cin, Cout); b_pw: (Cout,).  Returns NCHW output."""
    n, c_in, h, w = x_nchw.shape
    kh, kw, _ = w_dw.shape
    c_out = w_pw.shape[1]
    out_dtype = x_nchw.dtype

    h_out = (h + 2 * padding - dilation * (kh - 1) - 1) // stride + 1
    w_out = (w + 2 * padding - dilation * (kw - 1) - 1) // stride + 1

    # Lane-dense channel padding (multiple of 128) for both Cin (matmul K and
    # depthwise lanes) and Cout (unmasked output stores, full MXU N).
    c_in_pad = _round_up(c_in, 128)
    c_out_pad = _round_up(c_out, 128)

    in_itemsize = jnp.dtype(x_nchw.dtype).itemsize
    out_itemsize = jnp.dtype(out_dtype).itemsize
    w_padded = w + 2 * padding
    h_padded = h + 2 * padding

    th = _choose_h_tile(h_out, w_padded, w_out, c_in_pad, c_out_pad, kh,
                        stride, dilation, in_itemsize, out_itemsize)
    # TODO(synk): add W tiling too for extremely wide images where even one
    # haloed row window exceeds the VMEM budget.
    nt = pl.cdiv(h_out, th)
    h_out_pad = nt * th
    th_in = (th - 1) * stride + dilation * (kh - 1) + 1          # haloed rows
    h_in_need = (h_out_pad - 1) * stride + dilation * (kh - 1) + 1
    extra_h = max(0, h_in_need - h_padded)

    # NCHW -> NHWC; zero-pad spatial, extra bottom rows for the last H tile,
    # and channels (single jnp.pad -> single HBM copy of glue).
    x = jnp.transpose(x_nchw, (0, 2, 3, 1))
    x = jnp.pad(x, ((0, 0),
                    (padding, padding + extra_h),
                    (padding, padding),
                    (0, c_in_pad - c_in)))

    # bf16 inputs keep bf16 MXU operands (v6e/v7x fast path); else f32.
    mm_dtype = jnp.bfloat16 if x_nchw.dtype == jnp.bfloat16 else jnp.float32

    w_dw_p = jnp.pad(w_dw.astype(jnp.float32),
                     ((0, 0), (0, 0), (0, c_in_pad - c_in)))
    w_pw_f32 = w_pw.astype(jnp.float32)
    w_pw_p = jnp.pad(w_pw_f32, ((0, c_in_pad - c_in),
                                (0, c_out_pad - c_out))).astype(mm_dtype)
    # Fold the depthwise bias into the pointwise bias:
    #   (acc + b_dw) @ W + b_pw == acc @ W + (b_dw @ W + b_pw)
    b_fused = b_dw.astype(jnp.float32) @ w_pw_f32 + b_pw.astype(jnp.float32)
    b_fused = jnp.pad(b_fused, (0, c_out_pad - c_out)).reshape(1, c_out_pad)

    kernel = functools.partial(
        _atrous_sep_conv_kernel,
        kh=kh, kw=kw, stride=stride, dilation=dilation,
        th=th, th_in=th_in, w_out=w_out)

    out = pl.pallas_call(
        kernel,
        out_shape=jax.ShapeDtypeStruct((n, h_out_pad, w_out, c_out_pad),
                                       out_dtype),
        grid_spec=pltpu.PrefetchScalarGridSpec(
            num_scalar_prefetch=0,
            grid=(n, nt),
            in_specs=[
                pl.BlockSpec(memory_space=pl.ANY),                    # x in HBM
                pl.BlockSpec((kh, kw, c_in_pad), lambda b, t: (0, 0, 0)),
                pl.BlockSpec((c_in_pad, c_out_pad), lambda b, t: (0, 0)),
                pl.BlockSpec((1, c_out_pad), lambda b, t: (0, 0)),
            ],
            out_specs=pl.BlockSpec((None, th, w_out, c_out_pad),
                                   lambda b, t: (b, t, 0, 0)),
            scratch_shapes=[
                pltpu.VMEM((2, th_in, w_padded, c_in_pad), x.dtype),  # dbl buf
                pltpu.SemaphoreType.DMA((2,)),
            ]),
        compiler_params=pltpu.CompilerParams(
            dimension_semantics=("parallel", "arbitrary"),
            vmem_limit_bytes=48 * 1024 * 1024),
    )(x, w_dw_p, w_pw_p, b_fused)

    out = out[:, :h_out, :, :c_out]
    # NHWC -> NCHW to match PyTorch's output convention.
    return jnp.transpose(out, (0, 3, 1, 2))


def _reference(x_nchw, w_dw, b_dw, w_pw, b_pw, *, stride, padding, dilation):
    """Pure-JAX reference using lax.conv_general_dilated."""
    c_in = x_nchw.shape[1]
    x = jnp.transpose(x_nchw, (0, 2, 3, 1))
    k_dw = w_dw.reshape(w_dw.shape[0], w_dw.shape[1], 1, c_in)   # HWIO, grouped
    y = lax.conv_general_dilated(
        x, k_dw, window_strides=(stride, stride),
        padding=[(padding, padding), (padding, padding)],
        rhs_dilation=(dilation, dilation),
        dimension_numbers=('NHWC', 'HWIO', 'NHWC'),
        feature_group_count=c_in)
    y = y + b_dw
    k_pw = w_pw.reshape(1, 1, w_pw.shape[0], w_pw.shape[1])
    y = lax.conv_general_dilated(
        y, k_pw, window_strides=(1, 1), padding='VALID',
        dimension_numbers=('NHWC', 'HWIO', 'NHWC'))
    y = y + b_pw
    return jnp.transpose(y, (0, 3, 1, 2))


if __name__ == "__main__":
    # Small shapes consistent with the module's forward.
    N, C_IN, H, W = 2, 4, 16, 16
    C_OUT = 8
    K = 3
    STRIDE, PADDING, DILATION = 1, 2, 2   # atrous: dilation > 1

    key = jax.random.PRNGKey(0)
    kx, k1, k2, k3, k4 = jax.random.split(key, 5)

    x = jax.random.normal(kx, (N, C_IN, H, W), jnp.float32)

    # Deterministic kaiming-normal-style init (matches PyTorch shapes/statistics).
    # depthwise: torch weight (C_IN, 1, K, K), fan_in = K*K
    std_dw = math.sqrt(2.0 / (K * K))
    w_dw_torch = jax.random.normal(k1, (C_IN, 1, K, K), jnp.float32) * std_dw
    w_dw = jnp.transpose(w_dw_torch[:, 0], (1, 2, 0))            # (K, K, C_IN)
    bound_dw = 1.0 / math.sqrt(K * K)
    b_dw = jax.random.uniform(k2, (C_IN,), jnp.float32, -bound_dw, bound_dw)

    # pointwise: torch weight (C_OUT, C_IN, 1, 1), fan_in = C_IN
    std_pw = math.sqrt(2.0 / C_IN)
    w_pw_torch = jax.random.normal(k3, (C_OUT, C_IN, 1, 1), jnp.float32) * std_pw
    w_pw = jnp.transpose(w_pw_torch[:, :, 0, 0], (1, 0))         # (C_IN, C_OUT)
    bound_pw = 1.0 / math.sqrt(C_IN)
    b_pw = jax.random.uniform(k4, (C_OUT,), jnp.float32, -bound_pw, bound_pw)

    out = atrous_separable_conv(x, w_dw, b_dw, w_pw, b_pw,
                                stride=STRIDE, padding=PADDING, dilation=DILATION)
    out = jax.block_until_ready(out)

    ref = _reference(x, w_dw, b_dw, w_pw, b_pw,
                     stride=STRIDE, padding=PADDING, dilation=DILATION)
    assert out.shape == ref.shape, (out.shape, ref.shape)
    assert jnp.allclose(out, ref, atol=1e-4, rtol=1e-4), \
        float(jnp.max(jnp.abs(out - ref)))

    print("KERNEL_OK")
</pallas_src>

<mosaic_0001>
module attributes {stable_mosaic.version = 11 : i64} {
  func.func @_atrous_sep_conv_kernel(%arg0: i32, %arg1: i32, %arg2: memref<2x20x20x128xf32, #tpu.memory_space<any>>, %arg3: memref<3x3x128xf32, #tpu.memory_space<vmem>>, %arg4: memref<128x128xf32, #tpu.memory_space<vmem>>, %arg5: memref<1x128xf32, #tpu.memory_space<vmem>>, %arg6: memref<1x16x16x128xf32, #tpu.memory_space<vmem>>, %arg7: memref<2x20x20x128xf32, #tpu.memory_space<vmem>>, %arg8: memref<2x!tpu.dma_semaphore, #tpu.memory_space<semaphore_mem>>) attributes {dimension_semantics = [#tpu.dimension_semantics<parallel>, #tpu.dimension_semantics<arbitrary>], iteration_bounds = array<i64: 2, 1>, scalar_prefetch = 0 : i64, scratch_operands = 2 : i64, tpu.core_type = #tpu.core_type<tc>, window_params = [{}, {pipeline_mode = #tpu.pipeline_mode<synchronous>, transform_indices = @transform_1, window_bounds = array<i64: 3, 3, 128>}, {pipeline_mode = #tpu.pipeline_mode<synchronous>, transform_indices = @transform_2, window_bounds = array<i64: 128, 128>}, {pipeline_mode = #tpu.pipeline_mode<synchronous>, transform_indices = @transform_3, window_bounds = array<i64: 1, 128>}, {transform_indices = @transform_4, window_bounds = array<i64: 1, 16, 16, 128>}]} {
    %c2_i32 = arith.constant 2 : i32
    %c0_i32 = arith.constant 0 : i32
    %0 = arith.cmpi eq, %c2_i32, %c0_i32 : i32
    %c1_i32 = arith.constant 1 : i32
    %1 = arith.select %0, %c1_i32, %c2_i32 : i32
    %2 = arith.remsi %arg1, %1 : i32
    %c0_i32_0 = arith.constant 0 : i32
    %3 = arith.cmpi ne, %2, %c0_i32_0 : i32
    %c0_i32_1 = arith.constant 0 : i32
    %4 = arith.cmpi slt, %2, %c0_i32_1 : i32
    %c0_i32_2 = arith.constant 0 : i32
    %5 = arith.cmpi slt, %1, %c0_i32_2 : i32
    %6 = arith.xori %4, %5 : i1
    %7 = arith.andi %6, %3 : i1
    %8 = arith.addi %2, %1 : i32
    %9 = arith.select %7, %8, %2 : i32
    %c0_i32_3 = arith.constant 0 : i32
    %10 = arith.cmpi eq, %arg1, %c0_i32_3 : i32
    %11 = arith.extui %10 : i1 to i32
    %c0_i32_4 = arith.constant 0 : i32
    %12 = arith.cmpi ne, %11, %c0_i32_4 : i32
    scf.if %12 {
      %c16_i32 = arith.constant 16 : i32
      %116 = arith.muli %arg1, %c16_i32 : i32
      %c0_i32_50 = arith.constant 0 : i32
      %c0_i32_51 = arith.constant 0 : i32
      %117 = tpu.memref_slice %arg2[%arg0, %116, %c0_i32_50, %c0_i32_51] : memref<2x20x20x128xf32, #tpu.memory_space<any>> -> memref<1x20x20x128xf32, #tpu.memory_space<any>>
      %118 = tpu.memref_squeeze %117 : memref<1x20x20x128xf32, #tpu.memory_space<any>> -> memref<20x20x128xf32, #tpu.memory_space<any>>
      %c0_i32_52 = arith.constant 0 : i32
      %c0_i32_53 = arith.constant 0 : i32
      %c0_i32_54 = arith.constant 0 : i32
      %119 = tpu.memref_slice %arg7[%9, %c0_i32_52, %c0_i32_53, %c0_i32_54] : memref<2x20x20x128xf32, #tpu.memory_space<vmem>> -> memref<1x20x20x128xf32, #tpu.memory_space<vmem>>
      %120 = tpu.memref_squeeze %119 : memref<1x20x20x128xf32, #tpu.memory_space<vmem>> -> memref<20x20x128xf32, #tpu.memory_space<vmem>>
      %121 = tpu.memref_slice %arg8[%9] : memref<2x!tpu.dma_semaphore, #tpu.memory_space<semaphore_mem>> -> memref<1x!tpu.dma_semaphore, #tpu.memory_space<semaphore_mem>>
      %122 = tpu.memref_squeeze %121 : memref<1x!tpu.dma_semaphore, #tpu.memory_space<semaphore_mem>> -> memref<!tpu.dma_semaphore, #tpu.memory_space<semaphore_mem>>
      tpu.enqueue_dma source(%118 : memref<20x20x128xf32, #tpu.memory_space<any>>) target(%120 : memref<20x20x128xf32, #tpu.memory_space<vmem>>) target_semaphore(%122 : memref<!tpu.dma_semaphore, #tpu.memory_space<semaphore_mem>>)
    } else {
    }
    %c0_i32_5 = arith.constant 0 : i32
    %c0_i32_6 = arith.constant 0 : i32
    %c0_i32_7 = arith.constant 0 : i32
    %13 = tpu.memref_slice %arg2[%arg0, %c0_i32_5, %c0_i32_6, %c0_i32_7] : memref<2x20x20x128xf32, #tpu.memory_space<any>> -> memref<1x20x20x128xf32, #tpu.memory_space<any>>
    %14 = tpu.memref_squeeze %13 : memref<1x20x20x128xf32, #tpu.memory_space<any>> -> memref<20x20x128xf32, #tpu.memory_space<any>>
    %c0_i32_8 = arith.constant 0 : i32
    %c0_i32_9 = arith.constant 0 : i32
    %c0_i32_10 = arith.constant 0 : i32
    %15 = tpu.memref_slice %arg7[%9, %c0_i32_8, %c0_i32_9, %c0_i32_10] : memref<2x20x20x128xf32, #tpu.memory_space<vmem>> -> memref<1x20x20x128xf32, #tpu.memory_space<vmem>>
    %16 = tpu.memref_squeeze %15 : memref<1x20x20x128xf32, #tpu.memory_space<vmem>> -> memref<20x20x128xf32, #tpu.memory_space<vmem>>
    %17 = tpu.memref_slice %arg8[%9] : memref<2x!tpu.dma_semaphore, #tpu.memory_space<semaphore_mem>> -> memref<1x!tpu.dma_semaphore, #tpu.memory_space<semaphore_mem>>
    %18 = tpu.memref_squeeze %17 : memref<1x!tpu.dma_semaphore, #tpu.memory_space<semaphore_mem>> -> memref<!tpu.dma_semaphore, #tpu.memory_space<semaphore_mem>>
    tpu.wait_dma2 semaphore(%18 : memref<!tpu.dma_semaphore, #tpu.memory_space<semaphore_mem>>) src(%14 : memref<20x20x128xf32, #tpu.memory_space<any>>) dst(%16 : memref<20x20x128xf32, #tpu.memory_space<vmem>>)
    %c1_i32_11 = arith.constant 1 : i32
    %19 = arith.addi %arg1, %c1_i32_11 : i32
    %c1_i32_12 = arith.constant 1 : i32
    %20 = arith.cmpi slt, %19, %c1_i32_12 : i32
    %21 = arith.extui %20 : i1 to i32
    %c0_i32_13 = arith.constant 0 : i32
    %22 = arith.cmpi ne, %21, %c0_i32_13 : i32
    scf.if %22 {
      %c1_i32_50 = arith.constant 1 : i32
      %116 = arith.addi %arg1, %c1_i32_50 : i32
      %c1_i32_51 = arith.constant 1 : i32
      %117 = arith.addi %arg1, %c1_i32_51 : i32
      %c2_i32_52 = arith.constant 2 : i32
      %c0_i32_53 = arith.constant 0 : i32
      %118 = arith.cmpi eq, %c2_i32_52, %c0_i32_53 : i32
      %c1_i32_54 = arith.constant 1 : i32
      %119 = arith.select %118, %c1_i32_54, %c2_i32_52 : i32
      %120 = arith.remsi %117, %119 : i32
      %c0_i32_55 = arith.constant 0 : i32
      %121 = arith.cmpi ne, %120, %c0_i32_55 : i32
      %c0_i32_56 = arith.constant 0 : i32
      %122 = arith.cmpi slt, %120, %c0_i32_56 : i32
      %c0_i32_57 = arith.constant 0 : i32
      %123 = arith.cmpi slt, %119, %c0_i32_57 : i32
      %124 = arith.xori %122, %123 : i1
      %125 = arith.andi %124, %121 : i1
      %126 = arith.addi %120, %119 : i32
      %127 = arith.select %125, %126, %120 : i32
      %c16_i32 = arith.constant 16 : i32
      %128 = arith.muli %116, %c16_i32 : i32
      %c0_i32_58 = arith.constant 0 : i32
      %c0_i32_59 = arith.constant 0 : i32
      %129 = tpu.memref_slice %arg2[%arg0, %128, %c0_i32_58, %c0_i32_59] : memref<2x20x20x128xf32, #tpu.memory_space<any>> -> memref<1x20x20x128xf32, #tpu.memory_space<any>>
      %130 = tpu.memref_squeeze %129 : memref<1x20x20x128xf32, #tpu.memory_space<any>> -> memref<20x20x128xf32, #tpu.memory_space<any>>
      %c0_i32_60 = arith.constant 0 : i32
      %c0_i32_61 = arith.constant 0 : i32
      %c0_i32_62 = arith.constant 0 : i32
      %131 = tpu.memref_slice %arg7[%127, %c0_i32_60, %c0_i32_61, %c0_i32_62] : memref<2x20x20x128xf32, #tpu.memory_space<vmem>> -> memref<1x20x20x128xf32, #tpu.memory_space<vmem>>
      %132 = tpu.memref_squeeze %131 : memref<1x20x20x128xf32, #tpu.memory_space<vmem>> -> memref<20x20x128xf32, #tpu.memory_space<vmem>>
      %133 = tpu.memref_slice %arg8[%127] : memref<2x!tpu.dma_semaphore, #tpu.memory_space<semaphore_mem>> -> memref<1x!tpu.dma_semaphore, #tpu.memory_space<semaphore_mem>>
      %134 = tpu.memref_squeeze %133 : memref<1x!tpu.dma_semaphore, #tpu.memory_space<semaphore_mem>> -> memref<!tpu.dma_semaphore, #tpu.memory_space<semaphore_mem>>
      tpu.enqueue_dma source(%130 : memref<20x20x128xf32, #tpu.memory_space<any>>) target(%132 : memref<20x20x128xf32, #tpu.memory_space<vmem>>) target_semaphore(%134 : memref<!tpu.dma_semaphore, #tpu.memory_space<semaphore_mem>>)
    } else {
    }
    %c0 = arith.constant 0 : index
    %c0_14 = arith.constant 0 : index
    %c0_15 = arith.constant 0 : index
    %23 = vector.load %arg3[%c0, %c0_14, %c0_15] : memref<3x3x128xf32, #tpu.memory_space<vmem>>, vector<3x3x128xf32>
    %cst = arith.constant 0.000000e+00 : f32
    %24 = vector.broadcast %cst : f32 to vector<16x16x128xf32>
    %25 = arith.index_cast %9 : i32 to index
    %c0_16 = arith.constant 0 : index
    %c0_17 = arith.constant 0 : index
    %c0_18 = arith.constant 0 : index
    %26 = vector.load %arg7[%25, %c0_16, %c0_17, %c0_18] : memref<2x20x20x128xf32, #tpu.memory_space<vmem>>, vector<1x16x16x128xf32>
    %27 = vector.shape_cast %26 : vector<1x16x16x128xf32> to vector<16x16x128xf32>
    %28 = vector.extract_strided_slice %23 {offsets = [0, 0, 0], sizes = [1, 1, 128], strides = [1, 1, 1]} : vector<3x3x128xf32> to vector<1x1x128xf32>
    %29 = vector.shape_cast %28 : vector<1x1x128xf32> to vector<128xf32>
    %30 = vector.shape_cast %29 : vector<128xf32> to vector<1x1x128xf32>
    %31 = vector.broadcast %30 : vector<1x1x128xf32> to vector<16x16x128xf32>
    %32 = arith.mulf %27, %31 : vector<16x16x128xf32>
    %33 = arith.addf %24, %32 : vector<16x16x128xf32>
    %34 = arith.index_cast %9 : i32 to index
    %c0_19 = arith.constant 0 : index
    %c2 = arith.constant 2 : index
    %c0_20 = arith.constant 0 : index
    %35 = vector.load %arg7[%34, %c0_19, %c2, %c0_20] : memref<2x20x20x128xf32, #tpu.memory_space<vmem>>, vector<1x16x16x128xf32>
    %36 = vector.shape_cast %35 : vector<1x16x16x128xf32> to vector<16x16x128xf32>
    %37 = vector.extract_strided_slice %23 {offsets = [0, 1, 0], sizes = [1, 1, 128], strides = [1, 1, 1]} : vector<3x3x128xf32> to vector<1x1x128xf32>
    %38 = vector.shape_cast %37 : vector<1x1x128xf32> to vector<128xf32>
    %39 = vector.shape_cast %38 : vector<128xf32> to vector<1x1x128xf32>
    %40 = vector.broadcast %39 : vector<1x1x128xf32> to vector<16x16x128xf32>
    %41 = arith.mulf %36, %40 : vector<16x16x128xf32>
    %42 = arith.addf %33, %41 : vector<16x16x128xf32>
    %43 = arith.index_cast %9 : i32 to index
    %c0_21 = arith.constant 0 : index
    %c4 = arith.constant 4 : index
    %c0_22 = arith.constant 0 : index
    %44 = vector.load %arg7[%43, %c0_21, %c4, %c0_22] : memref<2x20x20x128xf32, #tpu.memory_space<vmem>>, vector<1x16x16x128xf32>
    %45 = vector.shape_cast %44 : vector<1x16x16x128xf32> to vector<16x16x128xf32>
    %46 = vector.extract_strided_slice %23 {offsets = [0, 2, 0], sizes = [1, 1, 128], strides = [1, 1, 1]} : vector<3x3x128xf32> to vector<1x1x128xf32>
    %47 = vector.shape_cast %46 : vector<1x1x128xf32> to vector<128xf32>
    %48 = vector.shape_cast %47 : vector<128xf32> to vector<1x1x128xf32>
    %49 = vector.broadcast %48 : vector<1x1x128xf32> to vector<16x16x128xf32>
    %50 = arith.mulf %45, %49 : vector<16x16x128xf32>
    %51 = arith.addf %42, %50 : vector<16x16x128xf32>
    %52 = arith.index_cast %9 : i32 to index
    %c2_23 = arith.constant 2 : index
    %c0_24 = arith.constant 0 : index
    %c0_25 = arith.constant 0 : index
    %53 = vector.load %arg7[%52, %c2_23, %c0_24, %c0_25] : memref<2x20x20x128xf32, #tpu.memory_space<vmem>>, vector<1x16x16x128xf32>
    %54 = vector.shape_cast %53 : vector<1x16x16x128xf32> to vector<16x16x128xf32>
    %55 = vector.extract_strided_slice %23 {offsets = [1, 0, 0], sizes = [1, 1, 128], strides = [1, 1, 1]} : vector<3x3x128xf32> to vector<1x1x128xf32>
    %56 = vector.shape_cast %55 : vector<1x1x128xf32> to vector<128xf32>
    %57 = vector.shape_cast %56 : vector<128xf32> to vector<1x1x128xf32>
    %58 = vector.broadcast %57 : vector<1x1x128xf32> to vector<16x16x128xf32>
    %59 = arith.mulf %54, %58 : vector<16x16x128xf32>
    %60 = arith.addf %51, %59 : vector<16x16x128xf32>
    %61 = arith.index_cast %9 : i32 to index
    %c2_26 = arith.constant 2 : index
    %c2_27 = arith.constant 2 : index
    %c0_28 = arith.constant 0 : index
    %62 = vector.load %arg7[%61, %c2_26, %c2_27, %c0_28] : memref<2x20x20x128xf32, #tpu.memory_space<vmem>>, vector<1x16x16x128xf32>
    %63 = vector.shape_cast %62 : vector<1x16x16x128xf32> to vector<16x16x128xf32>
    %64 = vector.extract_strided_slice %23 {offsets = [1, 1, 0], sizes = [1, 1, 128], strides = [1, 1, 1]} : vector<3x3x128xf32> to vector<1x1x128xf32>
    %65 = vector.shape_cast %64 : vector<1x1x128xf32> to vector<128xf32>
    %66 = vector.shape_cast %65 : vector<128xf32> to vector<1x1x128xf32>
    %67 = vector.broadcast %66 : vector<1x1x128xf32> to vector<16x16x128xf32>
    %68 = arith.mulf %63, %67 : vector<16x16x128xf32>
    %69 = arith.addf %60, %68 : vector<16x16x128xf32>
    %70 = arith.index_cast %9 : i32 to index
    %c2_29 = arith.constant 2 : index
    %c4_30 = arith.constant 4 : index
    %c0_31 = arith.constant 0 : index
    %71 = vector.load %arg7[%70, %c2_29, %c4_30, %c0_31] : memref<2x20x20x128xf32, #tpu.memory_space<vmem>>, vector<1x16x16x128xf32>
    %72 = vector.shape_cast %71 : vector<1x16x16x128xf32> to vector<16x16x128xf32>
    %73 = vector.extract_strided_slice %23 {offsets = [1, 2, 0], sizes = [1, 1, 128], strides = [1, 1, 1]} : vector<3x3x128xf32> to vector<1x1x128xf32>
    %74 = vector.shape_cast %73 : vector<1x1x128xf32> to vector<128xf32>
    %75 = vector.shape_cast %74 : vector<128xf32> to vector<1x1x128xf32>
    %76 = vector.broadcast %75 : vector<1x1x128xf32> to vector<16x16x128xf32>
    %77 = arith.mulf %72, %76 : vector<16x16x128xf32>
    %78 = arith.addf %69, %77 : vector<16x16x128xf32>
    %79 = arith.index_cast %9 : i32 to index
    %c4_32 = arith.constant 4 : index
    %c0_33 = arith.constant 0 : index
    %c0_34 = arith.constant 0 : index
    %80 = vector.load %arg7[%79, %c4_32, %c0_33, %c0_34] : memref<2x20x20x128xf32, #tpu.memory_space<vmem>>, vector<1x16x16x128xf32>
    %81 = vector.shape_cast %80 : vector<1x16x16x128xf32> to vector<16x16x128xf32>
    %82 = vector.extract_strided_slice %23 {offsets = [2, 0, 0], sizes = [1, 1, 128], strides = [1, 1, 1]} : vector<3x3x128xf32> to vector<1x1x128xf32>
    %83 = vector.shape_cast %82 : vector<1x1x128xf32> to vector<128xf32>
    %84 = vector.shape_cast %83 : vector<128xf32> to vector<1x1x128xf32>
    %85 = vector.broadcast %84 : vector<1x1x128xf32> to vector<16x16x128xf32>
    %86 = arith.mulf %81, %85 : vector<16x16x128xf32>
    %87 = arith.addf %78, %86 : vector<16x16x128xf32>
    %88 = arith.index_cast %9 : i32 to index
    %c4_35 = arith.constant 4 : index
    %c2_36 = arith.constant 2 : index
    %c0_37 = arith.constant 0 : index
    %89 = vector.load %arg7[%88, %c4_35, %c2_36, %c0_37] : memref<2x20x20x128xf32, #tpu.memory_space<vmem>>, vector<1x16x16x128xf32>
    %90 = vector.shape_cast %89 : vector<1x16x16x128xf32> to vector<16x16x128xf32>
    %91 = vector.extract_strided_slice %23 {offsets = [2, 1, 0], sizes = [1, 1, 128], strides = [1, 1, 1]} : vector<3x3x128xf32> to vector<1x1x128xf32>
    %92 = vector.shape_cast %91 : vector<1x1x128xf32> to vector<128xf32>
    %93 = vector.shape_cast %92 : vector<128xf32> to vector<1x1x128xf32>
    %94 = vector.broadcast %93 : vector<1x1x128xf32> to vector<16x16x128xf32>
    %95 = arith.mulf %90, %94 : vector<16x16x128xf32>
    %96 = arith.addf %87, %95 : vector<16x16x128xf32>
    %97 = arith.index_cast %9 : i32 to index
    %c4_38 = arith.constant 4 : index
    %c4_39 = arith.constant 4 : index
    %c0_40 = arith.constant 0 : index
    %98 = vector.load %arg7[%97, %c4_38, %c4_39, %c0_40] : memref<2x20x20x128xf32, #tpu.memory_space<vmem>>, vector<1x16x16x128xf32>
    %99 = vector.shape_cast %98 : vector<1x16x16x128xf32> to vector<16x16x128xf32>
    %100 = vector.extract_strided_slice %23 {offsets = [2, 2, 0], sizes = [1, 1, 128], strides = [1, 1, 1]} : vector<3x3x128xf32> to vector<1x1x128xf32>
    %101 = vector.shape_cast %100 : vector<1x1x128xf32> to vector<128xf32>
    %102 = vector.shape_cast %101 : vector<128xf32> to vector<1x1x128xf32>
    %103 = vector.broadcast %102 : vector<1x1x128xf32> to vector<16x16x128xf32>
    %104 = arith.mulf %99, %103 : vector<16x16x128xf32>
    %105 = arith.addf %96, %104 : vector<16x16x128xf32>
    %c0_41 = arith.constant 0 : index
    %c0_42 = arith.constant 0 : index
    %106 = vector.load %arg4[%c0_41, %c0_42] : memref<128x128xf32, #tpu.memory_space<vmem>>, vector<128x128xf32>
    %107 = vector.shape_cast %105 : vector<16x16x128xf32> to vector<256x128xf32>
    %cst_43 = arith.constant dense<0.000000e+00> : vector<256x128xf32>
    %108 = tpu.matmul %107, %106, %cst_43 {dimension_numbers = #tpu.dot_dimension_numbers<[1], [0], [0], [1], [0, 0, 1, 1], [], []>} : vector<256x128xf32>, vector<128x128xf32>, vector<256x128xf32> -> vector<256x128xf32>
    %c0_44 = arith.constant 0 : index
    %c0_45 = arith.constant 0 : index
    %109 = vector.load %arg5[%c0_44, %c0_45] : memref<1x128xf32, #tpu.memory_space<vmem>>, vector<1x128xf32>
    %110 = vector.broadcast %109 : vector<1x128xf32> to vector<256x128xf32>
    %111 = arith.addf %108, %110 : vector<256x128xf32>
    %112 = vector.shape_cast %111 : vector<256x128xf32> to vector<16x16x128xf32>
    %c0_46 = arith.constant 0 : index
    %c0_47 = arith.constant 0 : index
    %c0_48 = arith.constant 0 : index
    %c0_49 = arith.constant 0 : index
    %113 = vector.load %arg6[%c0_46, %c0_47, %c0_48, %c0_49] : memref<1x16x16x128xf32, #tpu.memory_space<vmem>>, vector<1x16x16x128xf32>
    %114 = vector.shape_cast %113 : vector<1x16x16x128xf32> to vector<16x16x128xf32>
    %115 = vector.shape_cast %112 : vector<16x16x128xf32> to vector<1x16x16x128xf32>
    tpu.vector_store %arg6[%c0_46, %c0_47, %c0_48, %c0_49], %115 {strides = array<i32>} : memref<1x16x16x128xf32, #tpu.memory_space<vmem>>, vector<1x16x16x128xf32>,
    return
  }
  func.func @transform_1(%arg0: i32, %arg1: i32) -> (i32, i32, i32) {
    %c0_i32 = arith.constant 0 : i32
    %c0_i32_0 = arith.constant 0 : i32
    %c0_i32_1 = arith.constant 0 : i32
    %c0_i32_2 = arith.constant 0 : i32
    return %c0_i32, %c0_i32_0, %c0_i32_1 : i32, i32, i32
  }
  func.func @transform_2(%arg0: i32, %arg1: i32) -> (i32, i32) {
    %c0_i32 = arith.constant 0 : i32
    %c0_i32_0 = arith.constant 0 : i32
    %c0_i32_1 = arith.constant 0 : i32
    return %c0_i32, %c0_i32_0 : i32, i32
  }
  func.func @transform_3(%arg0: i32, %arg1: i32) -> (i32, i32) {
    %c0_i32 = arith.constant 0 : i32
    %c0_i32_0 = arith.constant 0 : i32
    %c0_i32_1 = arith.constant 0 : i32
    return %c0_i32, %c0_i32_0 : i32, i32
  }
  func.func @transform_4(%arg0: i32, %arg1: i32) -> (i32, i32, i32, i32) {
    %c0_i32 = arith.constant 0 : i32
    %c0_i32_0 = arith.constant 0 : i32
    %c0_i32_1 = arith.constant 0 : i32
    return %arg0, %arg1, %c0_i32, %c0_i32_0 : i32, i32, i32, i32
  }
}

</mosaic_0001>

<llo_original>
// kernel: tpu_custom_call.1
$region0: #{tpu_custom_call.1}
  #allocation0 [shape = 'u32[]', space=smem, size = 0x4, offset = 0x4, fixed_abs, tag = 'smem constant byte address 0x4 - core index']
  #allocation1 [shape = 'u32[72,128]{1,0:T(1,128)}', space=vmem, size = 0x9000, scoped, tag = 'internal scratch']
  #allocation2 [shape = 'f32[2,20,20,128]{3,2,1,0:T(8,128)}', space=vmem, size = 0x78000, scoped, tag = 'scratch operand']
  #allocation3 [shape = 's32[2]{0}', space=sflag, size = 0x8, scoped, tag = 'scratch operand']
  #allocation6 [shape = 's32[]', space=sflag, size = 0x4, offset = 0, fixed_abs, tag = 'sflag constant byte address 0x0 - dummy sync flag']
  #allocation7 [shape = 's32[]', space=sflag, size = 0x4, offset = 0, fixed_abs, tag = 'sflag constant byte address 0x0 - dummy sync flag']
  %s0 = inlined_call_operand.vmem [shape: f32[2,20,20,128], index: 0, kind: input, shape index: {}]
  %s1 = inlined_call_operand.vmem [shape: f32[3,3,128], index: 1, kind: input, shape index: {}]
  %s2 = inlined_call_operand.vmem [shape: f32[128,128], index: 2, kind: input, shape index: {}]
  %s3 = inlined_call_operand.vmem [shape: f32[1,128], index: 3, kind: input, shape index: {}]
  %s4 = inlined_call_operand.hbm [shape: f32[2,16,16,128], index: 4, kind: output, shape index: {}]
  %s5 = sld [smem:[#allocation0]]
  $region97: #{tpu_custom_call.1} parent=0
    _
  %s7 = ssub.s32 1, %s5
  %s8 = scalar_select 0, %s7, %s5
  $region1: #{tpu_custom_call.1} parent=0
    #allocation4 [shape = 'u8[262144]{0}', space=vmem, size = 0x40000, scoped, tag = 'output window, operand 0']
    #allocation5 [shape = 's32[2]{0}', space=sflag, size = 0x8, scoped, tag = 'scoped memory for tpu_custom_call.1']
    %9 = vsyncpa [#allocation5], 0
    %s10 = scalar_lea.sflag [#allocation5], 1
    %11 = vsyncpa %s10, 0
    loop: start=0, step=1, limit=4
    $region2: #{tpu_custom_call.1} parent=1 // loop_pre_header
      _
    $region3: #{tpu_custom_call.1} parent=1 // loop_header
      %s13 = sphi 0, %s17
      %p14 = scmp.ge.s32.totalorder %s13, 4
      %s20 = sphi 0, %s32
      %s21 = sphi 0, %s28
      %s22 = sphi 0, %s20
      %s23 = sphi 0, %s21
      %s24 = sphi 0, %s22
      %s25 = sphi 0, %s23
      %s33 = sphi 0, %s33
      %s35 = sphi 0, %s33
      %s36 = sphi 0, %s35
      %s50 = sphi 0, %s36
      %s54 = sphi 0, %s54
      %s56 = sphi 0, %s54
      %s57 = sphi 0, %s56
      %s71 = sphi 0, %s57
      %s75 = sphi 0, %s75
      %s77 = sphi 0, %s75
      %s78 = sphi 0, %s77
      %s92 = sphi 0, %s78
      %s100 = sphi 0, %s102
      %s103 = sphi 0, %s100
      %s104 = sphi 0, %s103
      %s120 = sphi 0, %s104
    $region4: #{tpu_custom_call.1} parent=1 // loop_header_branch
      %16 = sbr.rel (%p14) target = $region8
    $region5: #{tpu_custom_call.1} parent=1 // loop_body
      %s18 = ssub.s32 %s13, 1
      %s19 = ssub.s32 %s13, 2
      %s26 = sadd.s32 1, %s21
      %p27 = scmp.ge.s32.totalorder %s26, 1
      %s28 = scalar_select %p27, 0, %s26
      %s29 = sadd.s32 1, %s20
      %s30 = scalar_select %p27, %s29, %s20
      %p31 = scmp.ge.s32.totalorder %s30, 2
      %s32 = scalar_select %p31, 0, %s30
      %s34 = sadd.s32 %s33, 1
      %p37 = scmp.eq.s32.totalorder %s13, 1
      %p38 = scmp.ne.s32.totalorder %s33, %s35
      %p39 = scmp.eq.s32.totalorder %s13, 0
      %p40 = por %p38, %p39
      %p41 = scmp.ne.s32.totalorder %s33, %s35
      %p42 = scmp.eq.s32.totalorder %s18, 1
      %p43 = por %p41, %p42
      %p44 = scmp.ne.s32.totalorder %s35, %s36
      %p45 = scmp.eq.s32.totalorder %s18, 0
      %p46 = por %p44, %p45
      %p47 = scmp.ne.s32.totalorder %s35, %s36
      %p48 = scmp.eq.s32.totalorder %s19, 1
      %p49 = por %p47, %p48
      %p51 = scmp.ne.s32.totalorder %s36, %s50
      %p52 = scmp.eq.s32.totalorder %s19, 0
      %p53 = por %p51, %p52
      %s55 = sadd.s32 %s54, 1
      %p58 = scmp.eq.s32.totalorder %s13, 1
      %p59 = scmp.ne.s32.totalorder %s54, %s56
      %p60 = scmp.eq.s32.totalorder %s13, 0
      %p61 = por %p59, %p60
      %p62 = scmp.ne.s32.totalorder %s54, %s56
      %p63 = scmp.eq.s32.totalorder %s18, 1
      %p64 = por %p62, %p63
      %p65 = scmp.ne.s32.totalorder %s56, %s57
      %p66 = scmp.eq.s32.totalorder %s18, 0
      %p67 = por %p65, %p66
      %p68 = scmp.ne.s32.totalorder %s56, %s57
      %p69 = scmp.eq.s32.totalorder %s19, 1
      %p70 = por %p68, %p69
      %p72 = scmp.ne.s32.totalorder %s57, %s71
      %p73 = scmp.eq.s32.totalorder %s19, 0
      %p74 = por %p72, %p73
      %s76 = sadd.s32 %s75, 1
      %p79 = scmp.eq.s32.totalorder %s13, 1
      %p80 = scmp.ne.s32.totalorder %s75, %s77
      %p81 = scmp.eq.s32.totalorder %s13, 0
      %p82 = por %p80, %p81
      %p83 = scmp.ne.s32.totalorder %s75, %s77
      %p84 = scmp.eq.s32.totalorder %s18, 1
      %p85 = por %p83, %p84
      %p86 = scmp.ne.s32.totalorder %s77, %s78
      %p87 = scmp.eq.s32.totalorder %s18, 0
      %p88 = por %p86, %p87
      %p89 = scmp.ne.s32.totalorder %s77, %s78
      %p90 = scmp.eq.s32.totalorder %s19, 1
      %p91 = por %p89, %p90
      %p93 = scmp.ne.s32.totalorder %s78, %s92
      %p94 = scmp.eq.s32.totalorder %s19, 0
      %p95 = por %p93, %p94
      %s96 = ssub.s32 %s20, %s32
      %s97 = ssub.s32 %s21, %s28
      %s98 = sor.u32 %s96, %s97
      %p99 = scmp.eq.s32.totalorder %s98, 0
      %s101 = sadd.s32 %s100, 1
      %s102 = scalar_select %p99, %s100, %s101
      %p105 = pneg %p99
      %p106 = scmp.eq.s32.totalorder %s13, 1
      %p107 = por %p105, %p106
      %p108 = scmp.ne.s32.totalorder %s100, %s103
      %p109 = scmp.eq.s32.totalorder %s13, 0
      %p110 = por %p108, %p109
      %p111 = scmp.ne.s32.totalorder %s100, %s103
      %p112 = scmp.eq.s32.totalorder %s18, 1
      %p113 = por %p111, %p112
      %p114 = scmp.ne.s32.totalorder %s103, %s104
      %p115 = scmp.eq.s32.totalorder %s18, 0
      %p116 = por %p114, %p115
      %p117 = scmp.ne.s32.totalorder %s103, %s104
      %p118 = scmp.eq.s32.totalorder %s19, 1
      %p119 = por %p117, %p118
      %p121 = scmp.ne.s32.totalorder %s104, %s120
      %p122 = scmp.eq.s32.totalorder %s19, 0
      %p123 = por %p121, %p122
      %p124 = scmp.le.s32.totalorder 1, %s13
      %p125 = scmp.lt.s32.totalorder %s13, 3
      %p126 = pnand %p124, %p125
      %p127 = pneg %p126
      // Predicated region
      $region9: #{tpu_custom_call.1} parent=5 // pred_check
        _
      $region10: #{tpu_custom_call.1} parent=5 // pred_check_branch
        %129 = sbr.rel (%p126) target = $region12
      $region11: #{tpu_custom_call.1} parent=5 // pred_region
        %s130 = ssub.s32 %s13, 1
        // Predicated region
        $region13: #{tpu_custom_call.1} parent=11 // pred_check
          %p131 = pneg %p46
        $region14: #{tpu_custom_call.1} parent=11 // pred_check_branch
          %133 = sbr.rel (%p131) target = $region16
        $region15: #{tpu_custom_call.1} parent=11 // pred_region
          _
        $region16: #{tpu_custom_call.1} parent=11 // pred_fallthru
          _
        // Predicated region
        $region17: #{tpu_custom_call.1} parent=11 // pred_check
          %p134 = pneg %p67
        $region18: #{tpu_custom_call.1} parent=11 // pred_check_branch
          %136 = sbr.rel (%p134) target = $region20
        $region19: #{tpu_custom_call.1} parent=11 // pred_region
          _
        $region20: #{tpu_custom_call.1} parent=11 // pred_fallthru
          _
        // Predicated region
        $region21: #{tpu_custom_call.1} parent=11 // pred_check
          %p137 = pneg %p88
        $region22: #{tpu_custom_call.1} parent=11 // pred_check_branch
          %139 = sbr.rel (%p137) target = $region24
        $region23: #{tpu_custom_call.1} parent=11 // pred_region
          _
        $region24: #{tpu_custom_call.1} parent=11 // pred_fallthru
          _
      $region12: #{tpu_custom_call.1} parent=5 // pred_fallthru
        _
      %p140 = scmp.lt.s32.totalorder %s13, 2
      // Predicated region
      $region25: #{tpu_custom_call.1} parent=5 // pred_check
        %p141 = pneg %p140
      $region26: #{tpu_custom_call.1} parent=5 // pred_check_branch
        %143 = sbr.rel (%p141) target = $region28
      $region27: #{tpu_custom_call.1} parent=5 // pred_region
        _
      $region28: #{tpu_custom_call.1} parent=5 // pred_fallthru
        _
      %p144 = scmp.le.s32.totalorder 1, %s13
      %p145 = scmp.lt.s32.totalorder %s13, 3
      %p146 = pnand %p144, %p145
      %p147 = pneg %p146
      // Predicated region
      $region29: #{tpu_custom_call.1} parent=5 // pred_check
        _
      $region30: #{tpu_custom_call.1} parent=5 // pred_check_branch
        %149 = sbr.rel (%p146) target = $region32
      $region31: #{tpu_custom_call.1} parent=5 // pred_region
        %s150 = ssub.s32 %s13, 1
        %p151 = pneg %p46
        %p152 = pneg %p43
        %p153 = pneg %p67
        %p154 = pneg %p64
        %p155 = pneg %p88
        %p156 = pneg %p85
        %p157 = pneg %p116
        %p158 = pneg %p113
        %s159 = sand.u32 %s103, 1
        %s160 = scalar_lea.sflag [#allocation5], %s159
        %s161 = sand.u32 %s103, 1
        %s162 = smul.addr %s161, 256
        %s163 = scalar_lea.vmem [#allocation4], %s162
        %s164 = smul.u32 16, %s23
        %p165 = scmp.lt.s32.totalorder %s23, 0
        %s166 = ssub.s32 0, %s23
        %s167 = scalar_select %p165, %s166, %s23
        %s168 = sand.u32 %s167, 1
        %s169 = ssub.s32 0, %s168
        %s170 = scalar_select %p165, %s169, %s168
        %p171 = scmp.ne.s32.totalorder %s170, 0
        %p172 = scmp.lt.s32.totalorder %s170, 0
        %p173 = pnand %p172, %p171
        %p174 = pneg %p173
        %s175 = sadd.s32 %s170, 2
        %s176 = scalar_select %p174, %s175, %s170
        %p177 = scmp.eq.s32.totalorder %s23, 0
        // Predicated region
        $region33: #{tpu_custom_call.1} parent=31 // pred_check
          %p178 = pneg %p177
        $region34: #{tpu_custom_call.1} parent=31 // pred_check_branch
          %180 = sbr.rel (%p178) target = $region36
        $region35: #{tpu_custom_call.1} parent=31 // pred_region
          %s181 = smul.u32 %s23, 16
          %s182 = smul.u32 %s181, 24
          %s183 = smul.u32 %s22, 480
          %s184 = sadd.s32 %s182, %s183
          %s185 = scalar_lea.vmem %s0, %s184
          %s186 = smul.u32 %s176, 480
          %s187 = scalar_lea.vmem [#allocation2], %s186
          %s188 = scalar_lea.sflag [#allocation3], %s176
          // Predicated region
          $region37: #{tpu_custom_call.1} parent=35 // pred_check
            _
          $region38: #{tpu_custom_call.1} parent=35 // pred_check_branch
            %190 = sbr.rel (0) target = $region40
          $region39: #{tpu_custom_call.1} parent=35 // pred_region
            %s191 = scalar_lea.vmem %s185, 16
            %s192 = scalar_lea.vmem %s187, 16 [#allocation2]
            loop: start=0, step=1, limit=1
            $region41: #{tpu_custom_call.1} parent=39 // loop_pre_header
              _
            $region42: #{tpu_custom_call.1} parent=39 // loop_header
              %s194 = sphi 0, %s198
              %p195 = scmp.ge.s32.totalorder %s194, 1
              %s199 = sphi %s185, %s185
              %s200 = sphi %s187, %s187
            $region43: #{tpu_custom_call.1} parent=39 // loop_header_branch
              %197 = sbr.rel (%p195) target = $region47
            $region44: #{tpu_custom_call.1} parent=39 // loop_body
              %v201 = vld [vmem:[%s199] sm:$0xff]
              %202 = vst [vmem:[%s200] sm:$0xff] %v201
              %v203 = vld [vmem:[%s199 + $0x8] sm:$0xff]
              %204 = vst [vmem:[%s200 + $0x8] sm:$0xff] %v203
              %v205 = vld [vmem:[%s199 + $0x18] sm:$0xff]
              %206 = vst [vmem:[%s200 + $0x18] sm:$0xff] %v205
              %v207 = vld [vmem:[%s199 + $0x20] sm:$0xff]
              %208 = vst [vmem:[%s200 + $0x20] sm:$0xff] %v207
              %v209 = vld [vmem:[%s199 + $0x30] sm:$0xff]
              %210 = vst [vmem:[%s200 + $0x30] sm:$0xff] %v209
              %v211 = vld [vmem:[%s199 + $0x38] sm:$0xff]
              %212 = vst [vmem:[%s200 + $0x38] sm:$0xff] %v211
              %v213 = vld [vmem:[%s199 + $0x48] sm:$0xff]
              %214 = vst [vmem:[%s200 + $0x48] sm:$0xff] %v213
              %v215 = vld [vmem:[%s199 + $0x50] sm:$0xff]
              %216 = vst [vmem:[%s200 + $0x50] sm:$0xff] %v215
              %v217 = vld [vmem:[%s199 + $0x60] sm:$0xff]
              %218 = vst [vmem:[%s200 + $0x60] sm:$0xff] %v217
              %v219 = vld [vmem:[%s199 + $0x68] sm:$0xff]
              %220 = vst [vmem:[%s200 + $0x68] sm:$0xff] %v219
              %v221 = vld [vmem:[%s199 + $0x78] sm:$0xff]
              %222 = vst [vmem:[%s200 + $0x78] sm:$0xff] %v221
              %v223 = vld [vmem:[%s199 + $0x80] sm:$0xff]
              %224 = vst [vmem:[%s200 + $0x80] sm:$0xff] %v223
              %v225 = vld [vmem:[%s199 + $0x90] sm:$0xff]
              %226 = vst [vmem:[%s200 + $0x90] sm:$0xff] %v225
              %v227 = vld [vmem:[%s199 + $0x98] sm:$0xff]
              %228 = vst [vmem:[%s200 + $0x98] sm:$0xff] %v227
              %v229 = vld [vmem:[%s199 + $0xa8] sm:$0xff]
              %230 = vst [vmem:[%s200 + $0xa8] sm:$0xff] %v229
              %v231 = vld [vmem:[%s199 + $0xb0] sm:$0xff]
              %232 = vst [vmem:[%s200 + $0xb0] sm:$0xff] %v231
              %v233 = vld [vmem:[%s199 + $0xc0] sm:$0xff]
              %234 = vst [vmem:[%s200 + $0xc0] sm:$0xff] %v233
              %v235 = vld [vmem:[%s199 + $0xc8] sm:$0xff]
              %236 = vst [vmem:[%s200 + $0xc8] sm:$0xff] %v235
              %v237 = vld [vmem:[%s199 + $0xd8] sm:$0xff]
              %238 = vst [vmem:[%s200 + $0xd8] sm:$0xff] %v237
              %v239 = vld [vmem:[%s199 + $0xe0] sm:$0xff]
              %240 = vst [vmem:[%s200 + $0xe0] sm:$0xff] %v239
              %v241 = vld [vmem:[%s199 + $0xf0] sm:$0xff]
              %242 = vst [vmem:[%s200 + $0xf0] sm:$0xff] %v241
              %v243 = vld [vmem:[%s199 + $0xf8] sm:$0xff]
              %244 = vst [vmem:[%s200 + $0xf8] sm:$0xff] %v243
              %v245 = vld [vmem:[%s199 + $0x108] sm:$0xff]
              %246 = vst [vmem:[%s200 + $0x108] sm:$0xff] %v245
              %v247 = vld [vmem:[%s199 + $0x110] sm:$0xff]
              %248 = vst [vmem:[%s200 + $0x110] sm:$0xff] %v247
              %v249 = vld [vmem:[%s199 + $0x120] sm:$0xff]
              %250 = vst [vmem:[%s200 + $0x120] sm:$0xff] %v249
              %v251 = vld [vmem:[%s199 + $0x128] sm:$0xff]
              %252 = vst [vmem:[%s200 + $0x128] sm:$0xff] %v251
              %v253 = vld [vmem:[%s199 + $0x138] sm:$0xff]
              %254 = vst [vmem:[%s200 + $0x138] sm:$0xff] %v253
              %v255 = vld [vmem:[%s199 + $0x140] sm:$0xff]
              %256 = vst [vmem:[%s200 + $0x140] sm:$0xff] %v255
              %v257 = vld [vmem:[%s199 + $0x150] sm:$0xff]
              %258 = vst [vmem:[%s200 + $0x150] sm:$0xff] %v257
              %v259 = vld [vmem:[%s199 + $0x158] sm:$0xff]
              %260 = vst [vmem:[%s200 + $0x158] sm:$0xff] %v259
              %v261 = vld [vmem:[%s199 + $0x168] sm:$0xff]
              %262 = vst [vmem:[%s200 + $0x168] sm:$0xff] %v261
              %v263 = vld [vmem:[%s199 + $0x170] sm:$0xff]
              %264 = vst [vmem:[%s200 + $0x170] sm:$0xff] %v263
              %v265 = vld [vmem:[%s199 + $0x180] sm:$0xff]
              %266 = vst [vmem:[%s200 + $0x180] sm:$0xff] %v265
              %v267 = vld [vmem:[%s199 + $0x188] sm:$0xff]
              %268 = vst [vmem:[%s200 + $0x188] sm:$0xff] %v267
              %v269 = vld [vmem:[%s199 + $0x198] sm:$0xff]
              %270 = vst [vmem:[%s200 + $0x198] sm:$0xff] %v269
              %v271 = vld [vmem:[%s199 + $0x1a0] sm:$0xff]
              %272 = vst [vmem:[%s200 + $0x1a0] sm:$0xff] %v271
              %v273 = vld [vmem:[%s199 + $0x1b0] sm:$0xff]
              %274 = vst [vmem:[%s200 + $0x1b0] sm:$0xff] %v273
              %v275 = vld [vmem:[%s199 + $0x1b8] sm:$0xff]
              %276 = vst [vmem:[%s200 + $0x1b8] sm:$0xff] %v275
              %v277 = vld [vmem:[%s199 + $0x1c8] sm:$0xff]
              %278 = vst [vmem:[%s200 + $0x1c8] sm:$0xff] %v277
              %v279 = vld [vmem:[%s199 + $0x1d0] sm:$0xff]
              %280 = vst [vmem:[%s200 + $0x1d0] sm:$0xff] %v279
            $region45: #{tpu_custom_call.1} parent=39 // loop_footer
              %s198 = sadd.s32 1, %s194
            $region46: #{tpu_custom_call.1} parent=39 // loop_footer_branch
              %193 = sbr.rel target = $region42
            $region47: #{tpu_custom_call.1} parent=39 // loop_exit
              _
            %s282 = ssub.s32 16, 1
            loop: start=0, step=1, limit=1
            $region48: #{tpu_custom_call.1} parent=39 // loop_pre_header
              _
            $region49: #{tpu_custom_call.1} parent=39 // loop_header
              %s284 = sphi 0, %s288
              %p285 = scmp.ge.s32.totalorder %s284, 1
              %s289 = sphi %s191, %s191
              %s290 = sphi %s192, %s192
            $region50: #{tpu_custom_call.1} parent=39 // loop_header_branch
              %287 = sbr.rel (%p285) target = $region54
            $region51: #{tpu_custom_call.1} parent=39 // loop_body
              %v291 = vld [vmem:[%s289] sm:%s282]
              %292 = vst [vmem:[%s290] sm:%s282] %v291
              %v293 = vld [vmem:[%s289 + $0x18] sm:%s282]
              %294 = vst [vmem:[%s290 + $0x18] sm:%s282] %v293
              %v295 = vld [vmem:[%s289 + $0x30] sm:%s282]
              %296 = vst [vmem:[%s290 + $0x30] sm:%s282] %v295
              %v297 = vld [vmem:[%s289 + $0x48] sm:%s282]
              %298 = vst [vmem:[%s290 + $0x48] sm:%s282] %v297
              %v299 = vld [vmem:[%s289 + $0x60] sm:%s282]
              %300 = vst [vmem:[%s290 + $0x60] sm:%s282] %v299
              %v301 = vld [vmem:[%s289 + $0x78] sm:%s282]
              %302 = vst [vmem:[%s290 + $0x78] sm:%s282] %v301
              %v303 = vld [vmem:[%s289 + $0x90] sm:%s282]
              %304 = vst [vmem:[%s290 + $0x90] sm:%s282] %v303
              %v305 = vld [vmem:[%s289 + $0xa8] sm:%s282]
              %306 = vst [vmem:[%s290 + $0xa8] sm:%s282] %v305
              %v307 = vld [vmem:[%s289 + $0xc0] sm:%s282]
              %308 = vst [vmem:[%s290 + $0xc0] sm:%s282] %v307
              %v309 = vld [vmem:[%s289 + $0xd8] sm:%s282]
              %310 = vst [vmem:[%s290 + $0xd8] sm:%s282] %v309
              %v311 = vld [vmem:[%s289 + $0xf0] sm:%s282]
              %312 = vst [vmem:[%s290 + $0xf0] sm:%s282] %v311
              %v313 = vld [vmem:[%s289 + $0x108] sm:%s282]
              %314 = vst [vmem:[%s290 + $0x108] sm:%s282] %v313
              %v315 = vld [vmem:[%s289 + $0x120] sm:%s282]
              %316 = vst [vmem:[%s290 + $0x120] sm:%s282] %v315
              %v317 = vld [vmem:[%s289 + $0x138] sm:%s282]
              %318 = vst [vmem:[%s290 + $0x138] sm:%s282] %v317
              %v319 = vld [vmem:[%s289 + $0x150] sm:%s282]
              %320 = vst [vmem:[%s290 + $0x150] sm:%s282] %v319
              %v321 = vld [vmem:[%s289 + $0x168] sm:%s282]
              %322 = vst [vmem:[%s290 + $0x168] sm:%s282] %v321
              %v323 = vld [vmem:[%s289 + $0x180] sm:%s282]
              %324 = vst [vmem:[%s290 + $0x180] sm:%s282] %v323
              %v325 = vld [vmem:[%s289 + $0x198] sm:%s282]
              %326 = vst [vmem:[%s290 + $0x198] sm:%s282] %v325
              %v327 = vld [vmem:[%s289 + $0x1b0] sm:%s282]
              %328 = vst [vmem:[%s290 + $0x1b0] sm:%s282] %v327
              %v329 = vld [vmem:[%s289 + $0x1c8] sm:%s282]
              %330 = vst [vmem:[%s290 + $0x1c8] sm:%s282] %v329
            $region52: #{tpu_custom_call.1} parent=39 // loop_footer
              %s288 = sadd.s32 1, %s284
            $region53: #{tpu_custom_call.1} parent=39 // loop_footer_branch
              %283 = sbr.rel target = $region49
            $region54: #{tpu_custom_call.1} parent=39 // loop_exit
              _
          $region40: #{tpu_custom_call.1} parent=35 // pred_fallthru
            _
          // Predicated region
          $region55: #{tpu_custom_call.1} parent=35 // pred_check
            _
          $region56: #{tpu_custom_call.1} parent=35 // pred_check_branch
            %333 = sbr.rel (0) target = $region58
          $region57: #{tpu_custom_call.1} parent=35 // pred_region
            %334 = vsyncadd %s188, 6400
          $region58: #{tpu_custom_call.1} parent=35 // pred_fallthru
            _
        $region36: #{tpu_custom_call.1} parent=31 // pred_fallthru
          _
        %s335 = scalar_lea.sflag [#allocation3], %s176
        %s336 = smul.u32 20, 20
        %s337 = smul.u32 %s336, 1
        %s338 = sshll.u32 %s337, 4
        %339 = dma.done %s335, %s338
        %s340 = sadd.s32 %s23, 1
        %p341 = scmp.lt.s32.totalorder %s340, 1
        // Predicated region
        $region59: #{tpu_custom_call.1} parent=31 // pred_check
          %p342 = pneg %p341
        $region60: #{tpu_custom_call.1} parent=31 // pred_check_branch
          %344 = sbr.rel (%p342) target = $region62
        $region61: #{tpu_custom_call.1} parent=31 // pred_region
          %p345 = scmp.lt.s32.totalorder %s340, 0
          %s346 = ssub.s32 0, %s340
          %s347 = scalar_select %p345, %s346, %s340
          %s348 = sand.u32 %s347, 1
          %s349 = ssub.s32 0, %s348
          %s350 = scalar_select %p345, %s349, %s348
          %p351 = scmp.ne.s32.totalorder %s350, 0
          %p352 = scmp.lt.s32.totalorder %s350, 0
          %p353 = pnand %p352, %p351
          %p354 = pneg %p353
          %s355 = sadd.s32 %s350, 2
          %s356 = scalar_select %p354, %s355, %s350
          %s357 = smul.u32 %s340, 16
          %s358 = smul.u32 %s357, 24
          %s359 = smul.u32 %s22, 480
          %s360 = sadd.s32 %s358, %s359
          %s361 = scalar_lea.vmem %s0, %s360
          %s362 = smul.u32 %s356, 480
          %s363 = scalar_lea.vmem [#allocation2], %s362
          %s364 = scalar_lea.sflag [#allocation3], %s356
          // Predicated region
          $region63: #{tpu_custom_call.1} parent=61 // pred_check
            _
          $region64: #{tpu_custom_call.1} parent=61 // pred_check_branch
            %366 = sbr.rel (0) target = $region66
          $region65: #{tpu_custom_call.1} parent=61 // pred_region
            %s367 = scalar_lea.vmem %s361, 16
            %s368 = scalar_lea.vmem %s363, 16 [#allocation2]
            loop: start=0, step=1, limit=1
            $region67: #{tpu_custom_call.1} parent=65 // loop_pre_header
              _
            $region68: #{tpu_custom_call.1} parent=65 // loop_header
              %s370 = sphi 0, %s374
              %p371 = scmp.ge.s32.totalorder %s370, 1
              %s375 = sphi %s361, %s361
              %s376 = sphi %s363, %s363
            $region69: #{tpu_custom_call.1} parent=65 // loop_header_branch
              %373 = sbr.rel (%p371) target = $region73
            $region70: #{tpu_custom_call.1} parent=65 // loop_body
              %v377 = vld [vmem:[%s375] sm:$0xff]
              %378 = vst [vmem:[%s376] sm:$0xff] %v377
              %v379 = vld [vmem:[%s375 + $0x8] sm:$0xff]
              %380 = vst [vmem:[%s376 + $0x8] sm:$0xff] %v379
              %v381 = vld [vmem:[%s375 + $0x18] sm:$0xff]
              %382 = vst [vmem:[%s376 + $0x18] sm:$0xff] %v381
              %v383 = vld [vmem:[%s375 + $0x20] sm:$0xff]
              %384 = vst [vmem:[%s376 + $0x20] sm:$0xff] %v383
              %v385 = vld [vmem:[%s375 + $0x30] sm:$0xff]
              %386 = vst [vmem:[%s376 + $0x30] sm:$0xff] %v385
              %v387 = vld [vmem:[%s375 + $0x38] sm:$0xff]
              %388 = vst [vmem:[%s376 + $0x38] sm:$0xff] %v387
              %v389 = vld [vmem:[%s375 + $0x48] sm:$0xff]
              %390 = vst [vmem:[%s376 + $0x48] sm:$0xff] %v389
              %v391 = vld [vmem:[%s375 + $0x50] sm:$0xff]
              %392 = vst [vmem:[%s376 + $0x50] sm:$0xff] %v391
              %v393 = vld [vmem:[%s375 + $0x60] sm:$0xff]
              %394 = vst [vmem:[%s376 + $0x60] sm:$0xff] %v393
              %v395 = vld [vmem:[%s375 + $0x68] sm:$0xff]
              %396 = vst [vmem:[%s376 + $0x68] sm:$0xff] %v395
              %v397 = vld [vmem:[%s375 + $0x78] sm:$0xff]
              %398 = vst [vmem:[%s376 + $0x78] sm:$0xff] %v397
              %v399 = vld [vmem:[%s375 + $0x80] sm:$0xff]
              %400 = vst [vmem:[%s376 + $0x80] sm:$0xff] %v399
              %v401 = vld [vmem:[%s375 + $0x90] sm:$0xff]
              %402 = vst [vmem:[%s376 + $0x90] sm:$0xff] %v401
              %v403 = vld [vmem:[%s375 + $0x98] sm:$0xff]
              %404 = vst [vmem:[%s376 + $0x98] sm:$0xff] %v403
              %v405 = vld [vmem:[%s375 + $0xa8] sm:$0xff]
              %406 = vst [vmem:[%s376 + $0xa8] sm:$0xff] %v405
              %v407 = vld [vmem:[%s375 + $0xb0] sm:$0xff]
              %408 = vst [vmem:[%s376 + $0xb0] sm:$0xff] %v407
              %v409 = vld [vmem:[%s375 + $0xc0] sm:$0xff]
              %410 = vst [vmem:[%s376 + $0xc0] sm:$0xff] %v409
              %v411 = vld [vmem:[%s375 + $0xc8] sm:$0xff]
              %412 = vst [vmem:[%s376 + $0xc8] sm:$0xff] %v411
              %v413 = vld [vmem:[%s375 + $0xd8] sm:$0xff]
              %414 = vst [vmem:[%s376 + $0xd8] sm:$0xff] %v413
              %v415 = vld [vmem:[%s375 + $0xe0] sm:$0xff]
              %416 = vst [vmem:[%s376 + $0xe0] sm:$0xff] %v415
              %v417 = vld [vmem:[%s375 + $0xf0] sm:$0xff]
              %418 = vst [vmem:[%s376 + $0xf0] sm:$0xff] %v417
              %v419 = vld [vmem:[%s375 + $0xf8] sm:$0xff]
              %420 = vst [vmem:[%s376 + $0xf8] sm:$0xff] %v419
              %v421 = vld [vmem:[%s375 + $0x108] sm:$0xff]
              %422 = vst [vmem:[%s376 + $0x108] sm:$0xff] %v421
              %v423 = vld [vmem:[%s375 + $0x110] sm:$0xff]
              %424 = vst [vmem:[%s376 + $0x110] sm:$0xff] %v423
              %v425 = vld [vmem:[%s375 + $0x120] sm:$0xff]
              %426 = vst [vmem:[%s376 + $0x120] sm:$0xff] %v425
              %v427 = vld [vmem:[%s375 + $0x128] sm:$0xff]
              %428 = vst [vmem:[%s376 + $0x128] sm:$0xff] %v427
              %v429 = vld [vmem:[%s375 + $0x138] sm:$0xff]
              %430 = vst [vmem:[%s376 + $0x138] sm:$0xff] %v429
              %v431 = vld [vmem:[%s375 + $0x140] sm:$0xff]
              %432 = vst [vmem:[%s376 + $0x140] sm:$0xff] %v431
              %v433 = vld [vmem:[%s375 + $0x150] sm:$0xff]
              %434 = vst [vmem:[%s376 + $0x150] sm:$0xff] %v433
              %v435 = vld [vmem:[%s375 + $0x158] sm:$0xff]
              %436 = vst [vmem:[%s376 + $0x158] sm:$0xff] %v435
              %v437 = vld [vmem:[%s375 + $0x168] sm:$0xff]
              %438 = vst [vmem:[%s376 + $0x168] sm:$0xff] %v437
              %v439 = vld [vmem:[%s375 + $0x170] sm:$0xff]
              %440 = vst [vmem:[%s376 + $0x170] sm:$0xff] %v439
              %v441 = vld [vmem:[%s375 + $0x180] sm:$0xff]
              %442 = vst [vmem:[%s376 + $0x180] sm:$0xff] %v441
              %v443 = vld [vmem:[%s375 + $0x188] sm:$0xff]
              %444 = vst [vmem:[%s376 + $0x188] sm:$0xff] %v443
              %v445 = vld [vmem:[%s375 + $0x198] sm:$0xff]
              %446 = vst [vmem:[%s376 + $0x198] sm:$0xff] %v445
              %v447 = vld [vmem:[%s375 + $0x1a0] sm:$0xff]
              %448 = vst [vmem:[%s376 + $0x1a0] sm:$0xff] %v447
              %v449 = vld [vmem:[%s375 + $0x1b0] sm:$0xff]
              %450 = vst [vmem:[%s376 + $0x1b0] sm:$0xff] %v449
              %v451 = vld [vmem:[%s375 + $0x1b8] sm:$0xff]
              %452 = vst [vmem:[%s376 + $0x1b8] sm:$0xff] %v451
              %v453 = vld [vmem:[%s375 + $0x1c8] sm:$0xff]
              %454 = vst [vmem:[%s376 + $0x1c8] sm:$0xff] %v453
              %v455 = vld [vmem:[%s375 + $0x1d0] sm:$0xff]
              %456 = vst [vmem:[%s376 + $0x1d0] sm:$0xff] %v455
            $region71: #{tpu_custom_call.1} parent=65 // loop_footer
              %s374 = sadd.s32 1, %s370
            $region72: #{tpu_custom_call.1} parent=65 // loop_footer_branch
              %369 = sbr.rel target = $region68
            $region73: #{tpu_custom_call.1} parent=65 // loop_exit
              _
            %s458 = ssub.s32 16, 1
            loop: start=0, step=1, limit=1
            $region74: #{tpu_custom_call.1} parent=65 // loop_pre_header
              _
            $region75: #{tpu_custom_call.1} parent=65 // loop_header
              %s460 = sphi 0, %s464
              %p461 = scmp.ge.s32.totalorder %s460, 1
              %s465 = sphi %s367, %s367
              %s466 = sphi %s368, %s368
            $region76: #{tpu_custom_call.1} parent=65 // loop_header_branch
              %463 = sbr.rel (%p461) target = $region80
            $region77: #{tpu_custom_call.1} parent=65 // loop_body
              %v467 = vld [vmem:[%s465] sm:%s458]
              %468 = vst [vmem:[%s466] sm:%s458] %v467
              %v469 = vld [vmem:[%s465 + $0x18] sm:%s458]
              %470 = vst [vmem:[%s466 + $0x18] sm:%s458] %v469
              %v471 = vld [vmem:[%s465 + $0x30] sm:%s458]
              %472 = vst [vmem:[%s466 + $0x30] sm:%s458] %v471
              %v473 = vld [vmem:[%s465 + $0x48] sm:%s458]
              %474 = vst [vmem:[%s466 + $0x48] sm:%s458] %v473
              %v475 = vld [vmem:[%s465 + $0x60] sm:%s458]
              %476 = vst [vmem:[%s466 + $0x60] sm:%s458] %v475
              %v477 = vld [vmem:[%s465 + $0x78] sm:%s458]
              %478 = vst [vmem:[%s466 + $0x78] sm:%s458] %v477
              %v479 = vld [vmem:[%s465 + $0x90] sm:%s458]
              %480 = vst [vmem:[%s466 + $0x90] sm:%s458] %v479
              %v481 = vld [vmem:[%s465 + $0xa8] sm:%s458]
              %482 = vst [vmem:[%s466 + $0xa8] sm:%s458] %v481
              %v483 = vld [vmem:[%s465 + $0xc0] sm:%s458]
              %484 = vst [vmem:[%s466 + $0xc0] sm:%s458] %v483
              %v485 = vld [vmem:[%s465 + $0xd8] sm:%s458]
              %486 = vst [vmem:[%s466 + $0xd8] sm:%s458] %v485
              %v487 = vld [vmem:[%s465 + $0xf0] sm:%s458]
              %488 = vst [vmem:[%s466 + $0xf0] sm:%s458] %v487
              %v489 = vld [vmem:[%s465 + $0x108] sm:%s458]
              %490 = vst [vmem:[%s466 + $0x108] sm:%s458] %v489
              %v491 = vld [vmem:[%s465 + $0x120] sm:%s458]
              %492 = vst [vmem:[%s466 + $0x120] sm:%s458] %v491
              %v493 = vld [vmem:[%s465 + $0x138] sm:%s458]
              %494 = vst [vmem:[%s466 + $0x138] sm:%s458] %v493
              %v495 = vld [vmem:[%s465 + $0x150] sm:%s458]
              %496 = vst [vmem:[%s466 + $0x150] sm:%s458] %v495
              %v497 = vld [vmem:[%s465 + $0x168] sm:%s458]
              %498 = vst [vmem:[%s466 + $0x168] sm:%s458] %v497
              %v499 = vld [vmem:[%s465 + $0x180] sm:%s458]
              %500 = vst [vmem:[%s466 + $0x180] sm:%s458] %v499
              %v501 = vld [vmem:[%s465 + $0x198] sm:%s458]
              %502 = vst [vmem:[%s466 + $0x198] sm:%s458] %v501
              %v503 = vld [vmem:[%s465 + $0x1b0] sm:%s458]
              %504 = vst [vmem:[%s466 + $0x1b0] sm:%s458] %v503
              %v505 = vld [vmem:[%s465 + $0x1c8] sm:%s458]
              %506 = vst [vmem:[%s466 + $0x1c8] sm:%s458] %v505
            $region78: #{tpu_custom_call.1} parent=65 // loop_footer
              %s464 = sadd.s32 1, %s460
            $region79: #{tpu_custom_call.1} parent=65 // loop_footer_branch
              %459 = sbr.rel target = $region75
            $region80: #{tpu_custom_call.1} parent=65 // loop_exit
              _
          $region66: #{tpu_custom_call.1} parent=61 // pred_fallthru
            _
          // Predicated region
          $region81: #{tpu_custom_call.1} parent=61 // pred_check
            _
          $region82: #{tpu_custom_call.1} parent=61 // pred_check_branch
            %509 = sbr.rel (0) target = $region84
          $region83: #{tpu_custom_call.1} parent=61 // pred_region
            %510 = vsyncadd %s364, 6400
          $region84: #{tpu_custom_call.1} parent=61 // pred_fallthru
            _
        $region62: #{tpu_custom_call.1} parent=31 // pred_fallthru
          _
        %v511 = vld [vmem:[%s1] sm:$0x7]
        %v512 = vld [vmem:[%s1 + $0x4] sm:$0x7]
        %v513 = vld [vmem:[%s1 + $0x8] sm:$0x7]
        %s514 = smul.u32 %s176, 480
        %s515 = scalar_lea.vmem [#allocation2], %s514
        %v516 = vld [vmem:[%s515] sm:$0xff]
        %v517 = vld [vmem:[%s515 + $0x8] sm:$0xff]
        %v518 = vld [vmem:[%s515 + $0x18] sm:$0xff]
        %v519 = vld [vmem:[%s515 + $0x20] sm:$0xff]
        %v520 = vld [vmem:[%s515 + $0x30] sm:$0xff]
        %v521 = vld [vmem:[%s515 + $0x38] sm:$0xff]
        %v522 = vld [vmem:[%s515 + $0x48] sm:$0xff]
        %v523 = vld [vmem:[%s515 + $0x50] sm:$0xff]
        %v524 = vld [vmem:[%s515 + $0x60] sm:$0xff]
        %v525 = vld [vmem:[%s515 + $0x68] sm:$0xff]
        %v526 = vld [vmem:[%s515 + $0x78] sm:$0xff]
        %v527 = vld [vmem:[%s515 + $0x80] sm:$0xff]
        %v528 = vld [vmem:[%s515 + $0x90] sm:$0xff]
        %v529 = vld [vmem:[%s515 + $0x98] sm:$0xff]
        %v530 = vld [vmem:[%s515 + $0xa8] sm:$0xff]
        %v531 = vld [vmem:[%s515 + $0xb0] sm:$0xff]
        %v532 = vld [vmem:[%s515 + $0xc0] sm:$0xff]
        %v533 = vld [vmem:[%s515 + $0xc8] sm:$0xff]
        %v534 = vld [vmem:[%s515 + $0xd8] sm:$0xff]
        %v535 = vld [vmem:[%s515 + $0xe0] sm:$0xff]
        %v536 = vld [vmem:[%s515 + $0xf0] sm:$0xff]
        %v537 = vld [vmem:[%s515 + $0xf8] sm:$0xff]
        %v538 = vld [vmem:[%s515 + $0x108] sm:$0xff]
        %v539 = vld [vmem:[%s515 + $0x110] sm:$0xff]
        %v540 = vld [vmem:[%s515 + $0x120] sm:$0xff]
        %v541 = vld [vmem:[%s515 + $0x128] sm:$0xff]
        %v542 = vld [vmem:[%s515 + $0x138] sm:$0xff]
        %v543 = vld [vmem:[%s515 + $0x140] sm:$0xff]
        %v544 = vld [vmem:[%s515 + $0x150] sm:$0xff]
        %v545 = vld [vmem:[%s515 + $0x158] sm:$0xff]
        %v546 = vld [vmem:[%s515 + $0x168] sm:$0xff]
        %v547 = vld [vmem:[%s515 + $0x170] sm:$0xff]
        %v548 = vperm.slane %v511, 0
        %v549 = vmul.f32 %v516, %v548
        %v550 = vmul.f32 %v517, %v548
        %v551 = vmul.f32 %v518, %v548
        %v552 = vmul.f32 %v519, %v548
        %v553 = vmul.f32 %v520, %v548
        %v554 = vmul.f32 %v521, %v548
        %v555 = vmul.f32 %v522, %v548
        %v556 = vmul.f32 %v523, %v548
        %v557 = vmul.f32 %v524, %v548
        %v558 = vmul.f32 %v525, %v548
        %v559 = vmul.f32 %v526, %v548
        %v560 = vmul.f32 %v527, %v548
        %v561 = vmul.f32 %v528, %v548
        %v562 = vmul.f32 %v529, %v548
        %v563 = vmul.f32 %v530, %v548
        %v564 = vmul.f32 %v531, %v548
        %v565 = vmul.f32 %v532, %v548
        %v566 = vmul.f32 %v533, %v548
        %v567 = vmul.f32 %v534, %v548
        %v568 = vmul.f32 %v535, %v548
        %v569 = vmul.f32 %v536, %v548
        %v570 = vmul.f32 %v537, %v548
        %v571 = vmul.f32 %v538, %v548
        %v572 = vmul.f32 %v539, %v548
        %v573 = vmul.f32 %v540, %v548
        %v574 = vmul.f32 %v541, %v548
        %v575 = vmul.f32 %v542, %v548
        %v576 = vmul.f32 %v543, %v548
        %v577 = vmul.f32 %v544, %v548
        %v578 = vmul.f32 %v545, %v548
        %v579 = vmul.f32 %v546, %v548
        %v580 = vmul.f32 %v547, %v548
        %v581 = vadd.f32 %v549, 0.0
        %v582 = vadd.f32 %v550, 0.0
        %v583 = vadd.f32 %v551, 0.0
        %v584 = vadd.f32 %v552, 0.0
        %v585 = vadd.f32 %v553, 0.0
        %v586 = vadd.f32 %v554, 0.0
        %v587 = vadd.f32 %v555, 0.0
        %v588 = vadd.f32 %v556, 0.0
        %v589 = vadd.f32 %v557, 0.0
        %v590 = vadd.f32 %v558, 0.0
        %v591 = vadd.f32 %v559, 0.0
        %v592 = vadd.f32 %v560, 0.0
        %v593 = vadd.f32 %v561, 0.0
        %v594 = vadd.f32 %v562, 0.0
        %v595 = vadd.f32 %v563, 0.0
        %v596 = vadd.f32 %v564, 0.0
        %v597 = vadd.f32 %v565, 0.0
        %v598 = vadd.f32 %v566, 0.0
        %v599 = vadd.f32 %v567, 0.0
        %v600 = vadd.f32 %v568, 0.0
        %v601 = vadd.f32 %v569, 0.0
        %v602 = vadd.f32 %v570, 0.0
        %v603 = vadd.f32 %v571, 0.0
        %v604 = vadd.f32 %v572, 0.0
        %v605 = vadd.f32 %v573, 0.0
        %v606 = vadd.f32 %v574, 0.0
        %v607 = vadd.f32 %v575, 0.0
        %v608 = vadd.f32 %v576, 0.0
        %v609 = vadd.f32 %v577, 0.0
        %v610 = vadd.f32 %v578, 0.0
        %v611 = vadd.f32 %v579, 0.0
        %v612 = vadd.f32 %v580, 0.0
        %v613 = vld [vmem:[%s515 + $0x2] sm:$0xff]
        %v614 = vld [vmem:[%s515 + $0xa] sm:$0xff]
        %v615 = vld [vmem:[%s515 + $0x1a] sm:$0xff]
        %v616 = vld [vmem:[%s515 + $0x22] sm:$0xff]
        %v617 = vld [vmem:[%s515 + $0x32] sm:$0xff]
        %v618 = vld [vmem:[%s515 + $0x3a] sm:$0xff]
        %v619 = vld [vmem:[%s515 + $0x4a] sm:$0xff]
        %v620 = vld [vmem:[%s515 + $0x52] sm:$0xff]
        %v621 = vld [vmem:[%s515 + $0x62] sm:$0xff]
        %v622 = vld [vmem:[%s515 + $0x6a] sm:$0xff]
        %v623 = vld [vmem:[%s515 + $0x7a] sm:$0xff]
        %v624 = vld [vmem:[%s515 + $0x82] sm:$0xff]
        %v625 = vld [vmem:[%s515 + $0x92] sm:$0xff]
        %v626 = vld [vmem:[%s515 + $0x9a] sm:$0xff]
        %v627 = vld [vmem:[%s515 + $0xaa] sm:$0xff]
        %v628 = vld [vmem:[%s515 + $0xb2] sm:$0xff]
        %v629 = vld [vmem:[%s515 + $0xc2] sm:$0xff]
        %v630 = vld [vmem:[%s515 + $0xca] sm:$0xff]
        %v631 = vld [vmem:[%s515 + $0xda] sm:$0xff]
        %v632 = vld [vmem:[%s515 + $0xe2] sm:$0xff]
        %v633 = vld [vmem:[%s515 + $0xf2] sm:$0xff]
        %v634 = vld [vmem:[%s515 + $0xfa] sm:$0xff]
        %v635 = vld [vmem:[%s515 + $0x10a] sm:$0xff]
        %v636 = vld [vmem:[%s515 + $0x112] sm:$0xff]
        %v637 = vld [vmem:[%s515 + $0x122] sm:$0xff]
        %v638 = vld [vmem:[%s515 + $0x12a] sm:$0xff]
        %v639 = vld [vmem:[%s515 + $0x13a] sm:$0xff]
        %v640 = vld [vmem:[%s515 + $0x142] sm:$0xff]
        %v641 = vld [vmem:[%s515 + $0x152] sm:$0xff]
        %v642 = vld [vmem:[%s515 + $0x15a] sm:$0xff]
        %v643 = vld [vmem:[%s515 + $0x16a] sm:$0xff]
        %v644 = vld [vmem:[%s515 + $0x172] sm:$0xff]
        %v645 = vperm.slane %v511, 1
        %v646 = vmul.f32 %v613, %v645
        %v647 = vmul.f32 %v614, %v645
        %v648 = vmul.f32 %v615, %v645
        %v649 = vmul.f32 %v616, %v645
        %v650 = vmul.f32 %v617, %v645
        %v651 = vmul.f32 %v618, %v645
        %v652 = vmul.f32 %v619, %v645
        %v653 = vmul.f32 %v620, %v645
        %v654 = vmul.f32 %v621, %v645
        %v655 = vmul.f32 %v622, %v645
        %v656 = vmul.f32 %v623, %v645
        %v657 = vmul.f32 %v624, %v645
        %v658 = vmul.f32 %v625, %v645
        %v659 = vmul.f32 %v626, %v645
        %v660 = vmul.f32 %v627, %v645
        %v661 = vmul.f32 %v628, %v645
        %v662 = vmul.f32 %v629, %v645
        %v663 = vmul.f32 %v630, %v645
        %v664 = vmul.f32 %v631, %v645
        %v665 = vmul.f32 %v632, %v645
        %v666 = vmul.f32 %v633, %v645
        %v667 = vmul.f32 %v634, %v645
        %v668 = vmul.f32 %v635, %v645
        %v669 = vmul.f32 %v636, %v645
        %v670 = vmul.f32 %v637, %v645
        %v671 = vmul.f32 %v638, %v645
        %v672 = vmul.f32 %v639, %v645
        %v673 = vmul.f32 %v640, %v645
        %v674 = vmul.f32 %v641, %v645
        %v675 = vmul.f32 %v642, %v645
        %v676 = vmul.f32 %v643, %v645
        %v677 = vmul.f32 %v644, %v645
        %v678 = vadd.f32 %v581, %v646
        %v679 = vadd.f32 %v582, %v647
        %v680 = vadd.f32 %v583, %v648
        %v681 = vadd.f32 %v584, %v649
        %v682 = vadd.f32 %v585, %v650
        %v683 = vadd.f32 %v586, %v651
        %v684 = vadd.f32 %v587, %v652
        %v685 = vadd.f32 %v588, %v653
        %v686 = vadd.f32 %v589, %v654
        %v687 = vadd.f32 %v590, %v655
        %v688 = vadd.f32 %v591, %v656
        %v689 = vadd.f32 %v592, %v657
        %v690 = vadd.f32 %v593, %v658
        %v691 = vadd.f32 %v594, %v659
        %v692 = vadd.f32 %v595, %v660
        %v693 = vadd.f32 %v596, %v661
        %v694 = vadd.f32 %v597, %v662
        %v695 = vadd.f32 %v598, %v663
        %v696 = vadd.f32 %v599, %v664
        %v697 = vadd.f32 %v600, %v665
        %v698 = vadd.f32 %v601, %v666
        %v699 = vadd.f32 %v602, %v667
        %v700 = vadd.f32 %v603, %v668
        %v701 = vadd.f32 %v604, %v669
        %v702 = vadd.f32 %v605, %v670
        %v703 = vadd.f32 %v606, %v671
        %v704 = vadd.f32 %v607, %v672
        %v705 = vadd.f32 %v608, %v673
        %v706 = vadd.f32 %v609, %v674
        %v707 = vadd.f32 %v610, %v675
        %v708 = vadd.f32 %v611, %v676
        %v709 = vadd.f32 %v612, %v677
        %v710 = vld [vmem:[%s515 + $0x4] sm:$0xff]
        %v711 = vld [vmem:[%s515 + $0xc] sm:$0xff]
        %v712 = vld [vmem:[%s515 + $0x1c] sm:$0xff]
        %v713 = vld [vmem:[%s515 + $0x24] sm:$0xff]
        %v714 = vld [vmem:[%s515 + $0x34] sm:$0xff]
        %v715 = vld [vmem:[%s515 + $0x3c] sm:$0xff]
        %v716 = vld [vmem:[%s515 + $0x4c] sm:$0xff]
        %v717 = vld [vmem:[%s515 + $0x54] sm:$0xff]
        %v718 = vld [vmem:[%s515 + $0x64] sm:$0xff]
        %v719 = vld [vmem:[%s515 + $0x6c] sm:$0xff]
        %v720 = vld [vmem:[%s515 + $0x7c] sm:$0xff]
        %v721 = vld [vmem:[%s515 + $0x84] sm:$0xff]
        %v722 = vld [vmem:[%s515 + $0x94] sm:$0xff]
        %v723 = vld [vmem:[%s515 + $0x9c] sm:$0xff]
        %v724 = vld [vmem:[%s515 + $0xac] sm:$0xff]
        %v725 = vld [vmem:[%s515 + $0xb4] sm:$0xff]
        %v726 = vld [vmem:[%s515 + $0xc4] sm:$0xff]
        %v727 = vld [vmem:[%s515 + $0xcc] sm:$0xff]
        %v728 = vld [vmem:[%s515 + $0xdc] sm:$0xff]
        %v729 = vld [vmem:[%s515 + $0xe4] sm:$0xff]
        %v730 = vld [vmem:[%s515 + $0xf4] sm:$0xff]
        %v731 = vld [vmem:[%s515 + $0xfc] sm:$0xff]
        %v732 = vld [vmem:[%s515 + $0x10c] sm:$0xff]
        %v733 = vld [vmem:[%s515 + $0x114] sm:$0xff]
        %v734 = vld [vmem:[%s515 + $0x124] sm:$0xff]
        %v735 = vld [vmem:[%s515 + $0x12c] sm:$0xff]
        %v736 = vld [vmem:[%s515 + $0x13c] sm:$0xff]
        %v737 = vld [vmem:[%s515 + $0x144] sm:$0xff]
        %v738 = vld [vmem:[%s515 + $0x154] sm:$0xff]
        %v739 = vld [vmem:[%s515 + $0x15c] sm:$0xff]
        %v740 = vld [vmem:[%s515 + $0x16c] sm:$0xff]
        %v741 = vld [vmem:[%s515 + $0x174] sm:$0xff]
        %v742 = vperm.slane %v511, 2
        %v743 = vmul.f32 %v710, %v742
        %v744 = vmul.f32 %v711, %v742
        %v745 = vmul.f32 %v712, %v742
        %v746 = vmul.f32 %v713, %v742
        %v747 = vmul.f32 %v714, %v742
        %v748 = vmul.f32 %v715, %v742
        %v749 = vmul.f32 %v716, %v742
        %v750 = vmul.f32 %v717, %v742
        %v751 = vmul.f32 %v718, %v742
        %v752 = vmul.f32 %v719, %v742
        %v753 = vmul.f32 %v720, %v742
        %v754 = vmul.f32 %v721, %v742
        %v755 = vmul.f32 %v722, %v742
        %v756 = vmul.f32 %v723, %v742
        %v757 = vmul.f32 %v724, %v742
        %v758 = vmul.f32 %v725, %v742
        %v759 = vmul.f32 %v726, %v742
        %v760 = vmul.f32 %v727, %v742
        %v761 = vmul.f32 %v728, %v742
        %v762 = vmul.f32 %v729, %v742
        %v763 = vmul.f32 %v730, %v742
        %v764 = vmul.f32 %v731, %v742
        %v765 = vmul.f32 %v732, %v742
        %v766 = vmul.f32 %v733, %v742
        %v767 = vmul.f32 %v734, %v742
        %v768 = vmul.f32 %v735, %v742
        %v769 = vmul.f32 %v736, %v742
        %v770 = vmul.f32 %v737, %v742
        %v771 = vmul.f32 %v738, %v742
        %v772 = vmul.f32 %v739, %v742
        %v773 = vmul.f32 %v740, %v742
        %v774 = vmul.f32 %v741, %v742
        %v775 = vadd.f32 %v678, %v743
        %v776 = vadd.f32 %v679, %v744
        %v777 = vadd.f32 %v680, %v745
        %v778 = vadd.f32 %v681, %v746
        %v779 = vadd.f32 %v682, %v747
        %v780 = vadd.f32 %v683, %v748
        %v781 = vadd.f32 %v684, %v749
        %v782 = vadd.f32 %v685, %v750
        %v783 = vadd.f32 %v686, %v751
        %v784 = vadd.f32 %v687, %v752
        %v785 = vadd.f32 %v688, %v753
        %v786 = vadd.f32 %v689, %v754
        %v787 = vadd.f32 %v690, %v755
        %v788 = vadd.f32 %v691, %v756
        %v789 = vadd.f32 %v692, %v757
        %v790 = vadd.f32 %v693, %v758
        %v791 = vadd.f32 %v694, %v759
        %v792 = vadd.f32 %v695, %v760
        %v793 = vadd.f32 %v696, %v761
        %v794 = vadd.f32 %v697, %v762
        %v795 = vadd.f32 %v698, %v763
        %v796 = vadd.f32 %v699, %v764
        %v797 = vadd.f32 %v700, %v765
        %v798 = vadd.f32 %v701, %v766
        %v799 = vadd.f32 %v702, %v767
        %v800 = vadd.f32 %v703, %v768
        %v801 = vadd.f32 %v704, %v769
        %v802 = vadd.f32 %v705, %v770
        %v803 = vadd.f32 %v706, %v771
        %v804 = vadd.f32 %v707, %v772
        %v805 = vadd.f32 %v708, %v773
        %v806 = vadd.f32 %v709, %v774
        %s807 = sadd.s32 48, %s514
        %s808 = scalar_lea.vmem [#allocation2], %s807
        %v809 = vld [vmem:[%s808] sm:$0xff]
        %v810 = vld [vmem:[%s808 + $0x8] sm:$0xff]
        %v811 = vld [vmem:[%s808 + $0x18] sm:$0xff]
        %v812 = vld [vmem:[%s808 + $0x20] sm:$0xff]
        %v813 = vld [vmem:[%s808 + $0x30] sm:$0xff]
        %v814 = vld [vmem:[%s808 + $0x38] sm:$0xff]
        %v815 = vld [vmem:[%s808 + $0x48] sm:$0xff]
        %v816 = vld [vmem:[%s808 + $0x50] sm:$0xff]
        %v817 = vld [vmem:[%s808 + $0x60] sm:$0xff]
        %v818 = vld [vmem:[%s808 + $0x68] sm:$0xff]
        %v819 = vld [vmem:[%s808 + $0x78] sm:$0xff]
        %v820 = vld [vmem:[%s808 + $0x80] sm:$0xff]
        %v821 = vld [vmem:[%s808 + $0x90] sm:$0xff]
        %v822 = vld [vmem:[%s808 + $0x98] sm:$0xff]
        %v823 = vld [vmem:[%s808 + $0xa8] sm:$0xff]
        %v824 = vld [vmem:[%s808 + $0xb0] sm:$0xff]
        %v825 = vld [vmem:[%s808 + $0xc0] sm:$0xff]
        %v826 = vld [vmem:[%s808 + $0xc8] sm:$0xff]
        %v827 = vld [vmem:[%s808 + $0xd8] sm:$0xff]
        %v828 = vld [vmem:[%s808 + $0xe0] sm:$0xff]
        %v829 = vld [vmem:[%s808 + $0xf0] sm:$0xff]
        %v830 = vld [vmem:[%s808 + $0xf8] sm:$0xff]
        %v831 = vld [vmem:[%s808 + $0x108] sm:$0xff]
        %v832 = vld [vmem:[%s808 + $0x110] sm:$0xff]
        %v833 = vld [vmem:[%s808 + $0x120] sm:$0xff]
        %v834 = vld [vmem:[%s808 + $0x128] sm:$0xff]
        %v835 = vld [vmem:[%s808 + $0x138] sm:$0xff]
        %v836 = vld [vmem:[%s808 + $0x140] sm:$0xff]
        %v837 = vld [vmem:[%s808 + $0x150] sm:$0xff]
        %v838 = vld [vmem:[%s808 + $0x158] sm:$0xff]
        %v839 = vld [vmem:[%s808 + $0x168] sm:$0xff]
        %v840 = vld [vmem:[%s808 + $0x170] sm:$0xff]
        %v841 = vperm.slane %v512, 0
        %v842 = vmul.f32 %v809, %v841
        %v843 = vmul.f32 %v810, %v841
        %v844 = vmul.f32 %v811, %v841
        %v845 = vmul.f32 %v812, %v841
        %v846 = vmul.f32 %v813, %v841
        %v847 = vmul.f32 %v814, %v841
        %v848 = vmul.f32 %v815, %v841
        %v849 = vmul.f32 %v816, %v841
        %v850 = vmul.f32 %v817, %v841
        %v851 = vmul.f32 %v818, %v841
        %v852 = vmul.f32 %v819, %v841
        %v853 = vmul.f32 %v820, %v841
        %v854 = vmul.f32 %v821, %v841
        %v855 = vmul.f32 %v822, %v841
        %v856 = vmul.f32 %v823, %v841
        %v857 = vmul.f32 %v824, %v841
        %v858 = vmul.f32 %v825, %v841
        %v859 = vmul.f32 %v826, %v841
        %v860 = vmul.f32 %v827, %v841
        %v861 = vmul.f32 %v828, %v841
        %v862 = vmul.f32 %v829, %v841
        %v863 = vmul.f32 %v830, %v841
        %v864 = vmul.f32 %v831, %v841
        %v865 = vmul.f32 %v832, %v841
        %v866 = vmul.f32 %v833, %v841
        %v867 = vmul.f32 %v834, %v841
        %v868 = vmul.f32 %v835, %v841
        %v869 = vmul.f32 %v836, %v841
        %v870 = vmul.f32 %v837, %v841
        %v871 = vmul.f32 %v838, %v841
        %v872 = vmul.f32 %v839, %v841
        %v873 = vmul.f32 %v840, %v841
        %v874 = vadd.f32 %v775, %v842
        %v875 = vadd.f32 %v776, %v843
        %v876 = vadd.f32 %v777, %v844
        %v877 = vadd.f32 %v778, %v845
        %v878 = vadd.f32 %v779, %v846
        %v879 = vadd.f32 %v780, %v847
        %v880 = vadd.f32 %v781, %v848
        %v881 = vadd.f32 %v782, %v849
        %v882 = vadd.f32 %v783, %v850
        %v883 = vadd.f32 %v784, %v851
        %v884 = vadd.f32 %v785, %v852
        %v885 = vadd.f32 %v786, %v853
        %v886 = vadd.f32 %v787, %v854
        %v887 = vadd.f32 %v788, %v855
        %v888 = vadd.f32 %v789, %v856
        %v889 = vadd.f32 %v790, %v857
        %v890 = vadd.f32 %v791, %v858
        %v891 = vadd.f32 %v792, %v859
        %v892 = vadd.f32 %v793, %v860
        %v893 = vadd.f32 %v794, %v861
        %v894 = vadd.f32 %v795, %v862
        %v895 = vadd.f32 %v796, %v863
        %v896 = vadd.f32 %v797, %v864
        %v897 = vadd.f32 %v798, %v865
        %v898 = vadd.f32 %v799, %v866
        %v899 = vadd.f32 %v800, %v867
        %v900 = vadd.f32 %v801, %v868
        %v901 = vadd.f32 %v802, %v869
        %v902 = vadd.f32 %v803, %v870
        %v903 = vadd.f32 %v804, %v871
        %v904 = vadd.f32 %v805, %v872
        %v905 = vadd.f32 %v806, %v873
        %v906 = vld [vmem:[%s808 + $0x2] sm:$0xff]
        %v907 = vld [vmem:[%s808 + $0xa] sm:$0xff]
        %v908 = vld [vmem:[%s808 + $0x1a] sm:$0xff]
        %v909 = vld [vmem:[%s808 + $0x22] sm:$0xff]
        %v910 = vld [vmem:[%s808 + $0x32] sm:$0xff]
        %v911 = vld [vmem:[%s808 + $0x3a] sm:$0xff]
        %v912 = vld [vmem:[%s808 + $0x4a] sm:$0xff]
        %v913 = vld [vmem:[%s808 + $0x52] sm:$0xff]
        %v914 = vld [vmem:[%s808 + $0x62] sm:$0xff]
        %v915 = vld [vmem:[%s808 + $0x6a] sm:$0xff]
        %v916 = vld [vmem:[%s808 + $0x7a] sm:$0xff]
        %v917 = vld [vmem:[%s808 + $0x82] sm:$0xff]
        %v918 = vld [vmem:[%s808 + $0x92] sm:$0xff]
        %v919 = vld [vmem:[%s808 + $0x9a] sm:$0xff]
        %v920 = vld [vmem:[%s808 + $0xaa] sm:$0xff]
        %v921 = vld [vmem:[%s808 + $0xb2] sm:$0xff]
        %v922 = vld [vmem:[%s808 + $0xc2] sm:$0xff]
        %v923 = vld [vmem:[%s808 + $0xca] sm:$0xff]
        %v924 = vld [vmem:[%s808 + $0xda] sm:$0xff]
        %v925 = vld [vmem:[%s808 + $0xe2] sm:$0xff]
        %v926 = vld [vmem:[%s808 + $0xf2] sm:$0xff]
        %v927 = vld [vmem:[%s808 + $0xfa] sm:$0xff]
        %v928 = vld [vmem:[%s808 + $0x10a] sm:$0xff]
        %v929 = vld [vmem:[%s808 + $0x112] sm:$0xff]
        %v930 = vld [vmem:[%s808 + $0x122] sm:$0xff]
        %v931 = vld [vmem:[%s808 + $0x12a] sm:$0xff]
        %v932 = vld [vmem:[%s808 + $0x13a] sm:$0xff]
        %v933 = vld [vmem:[%s808 + $0x142] sm:$0xff]
        %v934 = vld [vmem:[%s808 + $0x152] sm:$0xff]
        %v935 = vld [vmem:[%s808 + $0x15a] sm:$0xff]
        %v936 = vld [vmem:[%s808 + $0x16a] sm:$0xff]
        %v937 = vld [vmem:[%s808 + $0x172] sm:$0xff]
        %v938 = vperm.slane %v512, 1
        %v939 = vmul.f32 %v906, %v938
        %v940 = vmul.f32 %v907, %v938
        %v941 = vmul.f32 %v908, %v938
        %v942 = vmul.f32 %v909, %v938
        %v943 = vmul.f32 %v910, %v938
        %v944 = vmul.f32 %v911, %v938
        %v945 = vmul.f32 %v912, %v938
        %v946 = vmul.f32 %v913, %v938
        %v947 = vmul.f32 %v914, %v938
        %v948 = vmul.f32 %v915, %v938
        %v949 = vmul.f32 %v916, %v938
        %v950 = vmul.f32 %v917, %v938
        %v951 = vmul.f32 %v918, %v938
        %v952 = vmul.f32 %v919, %v938
        %v953 = vmul.f32 %v920, %v938
        %v954 = vmul.f32 %v921, %v938
        %v955 = vmul.f32 %v922, %v938
        %v956 = vmul.f32 %v923, %v938
        %v957 = vmul.f32 %v924, %v938
        %v958 = vmul.f32 %v925, %v938
        %v959 = vmul.f32 %v926, %v938
        %v960 = vmul.f32 %v927, %v938
        %v961 = vmul.f32 %v928, %v938
        %v962 = vmul.f32 %v929, %v938
        %v963 = vmul.f32 %v930, %v938
        %v964 = vmul.f32 %v931, %v938
        %v965 = vmul.f32 %v932, %v938
        %v966 = vmul.f32 %v933, %v938
        %v967 = vmul.f32 %v934, %v938
        %v968 = vmul.f32 %v935, %v938
        %v969 = vmul.f32 %v936, %v938
        %v970 = vmul.f32 %v937, %v938
        %v971 = vadd.f32 %v874, %v939
        %v972 = vadd.f32 %v875, %v940
        %v973 = vadd.f32 %v876, %v941
        %v974 = vadd.f32 %v877, %v942
        %v975 = vadd.f32 %v878, %v943
        %v976 = vadd.f32 %v879, %v944
        %v977 = vadd.f32 %v880, %v945
        %v978 = vadd.f32 %v881, %v946
        %v979 = vadd.f32 %v882, %v947
        %v980 = vadd.f32 %v883, %v948
        %v981 = vadd.f32 %v884, %v949
        %v982 = vadd.f32 %v885, %v950
        %v983 = vadd.f32 %v886, %v951
        %v984 = vadd.f32 %v887, %v952
        %v985 = vadd.f32 %v888, %v953
        %v986 = vadd.f32 %v889, %v954
        %v987 = vadd.f32 %v890, %v955
        %v988 = vadd.f32 %v891, %v956
        %v989 = vadd.f32 %v892, %v957
        %v990 = vadd.f32 %v893, %v958
        %v991 = vadd.f32 %v894, %v959
        %v992 = vadd.f32 %v895, %v960
        %v993 = vadd.f32 %v896, %v961
        %v994 = vadd.f32 %v897, %v962
        %v995 = vadd.f32 %v898, %v963
        %v996 = vadd.f32 %v899, %v964
        %v997 = vadd.f32 %v900, %v965
        %v998 = vadd.f32 %v901, %v966
        %v999 = vadd.f32 %v902, %v967
        %v1000 = vadd.f32 %v903, %v968
        %v1001 = vadd.f32 %v904, %v969
        %v1002 = vadd.f32 %v905, %v970
        %v1003 = vld [vmem:[%s808 + $0x4] sm:$0xff]
        %v1004 = vld [vmem:[%s808 + $0xc] sm:$0xff]
        %v1005 = vld [vmem:[%s808 + $0x1c] sm:$0xff]
        %v1006 = vld [vmem:[%s808 + $0x24] sm:$0xff]
        %v1007 = vld [vmem:[%s808 + $0x34] sm:$0xff]
        %v1008 = vld [vmem:[%s808 + $0x3c] sm:$0xff]
        %v1009 = vld [vmem:[%s808 + $0x4c] sm:$0xff]
        %v1010 = vld [vmem:[%s808 + $0x54] sm:$0xff]
        %v1011 = vld [vmem:[%s808 + $0x64] sm:$0xff]
        %v1012 = vld [vmem:[%s808 + $0x6c] sm:$0xff]
        %v1013 = vld [vmem:[%s808 + $0x7c] sm:$0xff]
        %v1014 = vld [vmem:[%s808 + $0x84] sm:$0xff]
        %v1015 = vld [vmem:[%s808 + $0x94] sm:$0xff]
        %v1016 = vld [vmem:[%s808 + $0x9c] sm:$0xff]
        %v1017 = vld [vmem:[%s808 + $0xac] sm:$0xff]
        %v1018 = vld [vmem:[%s808 + $0xb4] sm:$0xff]
        %v1019 = vld [vmem:[%s808 + $0xc4] sm:$0xff]
        %v1020 = vld [vmem:[%s808 + $0xcc] sm:$0xff]
        %v1021 = vld [vmem:[%s808 + $0xdc] sm:$0xff]
        %v1022 = vld [vmem:[%s808 + $0xe4] sm:$0xff]
        %v1023 = vld [vmem:[%s808 + $0xf4] sm:$0xff]
        %v1024 = vld [vmem:[%s808 + $0xfc] sm:$0xff]
        %v1025 = vld [vmem:[%s808 + $0x10c] sm:$0xff]
        %v1026 = vld [vmem:[%s808 + $0x114] sm:$0xff]
        %v1027 = vld [vmem:[%s808 + $0x124] sm:$0xff]
        %v1028 = vld [vmem:[%s808 + $0x12c] sm:$0xff]
        %v1029 = vld [vmem:[%s808 + $0x13c] sm:$0xff]
        %v1030 = vld [vmem:[%s808 + $0x144] sm:$0xff]
        %v1031 = vld [vmem:[%s808 + $0x154] sm:$0xff]
        %v1032 = vld [vmem:[%s808 + $0x15c] sm:$0xff]
        %v1033 = vld [vmem:[%s808 + $0x16c] sm:$0xff]
        %v1034 = vld [vmem:[%s808 + $0x174] sm:$0xff]
        %v1035 = vperm.slane %v512, 2
        %v1036 = vmul.f32 %v1003, %v1035
        %v1037 = vmul.f32 %v1004, %v1035
        %v1038 = vmul.f32 %v1005, %v1035
        %v1039 = vmul.f32 %v1006, %v1035
        %v1040 = vmul.f32 %v1007, %v1035
        %v1041 = vmul.f32 %v1008, %v1035
        %v1042 = vmul.f32 %v1009, %v1035
        %v1043 = vmul.f32 %v1010, %v1035
        %v1044 = vmul.f32 %v1011, %v1035
        %v1045 = vmul.f32 %v1012, %v1035
        %v1046 = vmul.f32 %v1013, %v1035
        %v1047 = vmul.f32 %v1014, %v1035
        %v1048 = vmul.f32 %v1015, %v1035
        %v1049 = vmul.f32 %v1016, %v1035
        %v1050 = vmul.f32 %v1017, %v1035
        %v1051 = vmul.f32 %v1018, %v1035
        %v1052 = vmul.f32 %v1019, %v1035
        %v1053 = vmul.f32 %v1020, %v1035
        %v1054 = vmul.f32 %v1021, %v1035
        %v1055 = vmul.f32 %v1022, %v1035
        %v1056 = vmul.f32 %v1023, %v1035
        %v1057 = vmul.f32 %v1024, %v1035
        %v1058 = vmul.f32 %v1025, %v1035
        %v1059 = vmul.f32 %v1026, %v1035
        %v1060 = vmul.f32 %v1027, %v1035
        %v1061 = vmul.f32 %v1028, %v1035
        %v1062 = vmul.f32 %v1029, %v1035
        %v1063 = vmul.f32 %v1030, %v1035
        %v1064 = vmul.f32 %v1031, %v1035
        %v1065 = vmul.f32 %v1032, %v1035
        %v1066 = vmul.f32 %v1033, %v1035
        %v1067 = vmul.f32 %v1034, %v1035
        %v1068 = vadd.f32 %v971, %v1036
        %v1069 = vadd.f32 %v972, %v1037
        %v1070 = vadd.f32 %v973, %v1038
        %v1071 = vadd.f32 %v974, %v1039
        %v1072 = vadd.f32 %v975, %v1040
        %v1073 = vadd.f32 %v976, %v1041
        %v1074 = vadd.f32 %v977, %v1042
        %v1075 = vadd.f32 %v978, %v1043
        %v1076 = vadd.f32 %v979, %v1044
        %v1077 = vadd.f32 %v980, %v1045
        %v1078 = vadd.f32 %v981, %v1046
        %v1079 = vadd.f32 %v982, %v1047
        %v1080 = vadd.f32 %v983, %v1048
        %v1081 = vadd.f32 %v984, %v1049
        %v1082 = vadd.f32 %v985, %v1050
        %v1083 = vadd.f32 %v986, %v1051
        %v1084 = vadd.f32 %v987, %v1052
        %v1085 = vadd.f32 %v988, %v1053
        %v1086 = vadd.f32 %v989, %v1054
        %v1087 = vadd.f32 %v990, %v1055
        %v1088 = vadd.f32 %v991, %v1056
        %v1089 = vadd.f32 %v992, %v1057
        %v1090 = vadd.f32 %v993, %v1058
        %v1091 = vadd.f32 %v994, %v1059
        %v1092 = vadd.f32 %v995, %v1060
        %v1093 = vadd.f32 %v996, %v1061
        %v1094 = vadd.f32 %v997, %v1062
        %v1095 = vadd.f32 %v998, %v1063
        %v1096 = vadd.f32 %v999, %v1064
        %v1097 = vadd.f32 %v1000, %v1065
        %v1098 = vadd.f32 %v1001, %v1066
        %v1099 = vadd.f32 %v1002, %v1067
        %s1100 = sadd.s32 96, %s514
        %s1101 = scalar_lea.vmem [#allocation2], %s1100
        %v1102 = vld [vmem:[%s1101] sm:$0xff]
        %v1103 = vld [vmem:[%s1101 + $0x8] sm:$0xff]
        %v1104 = vld [vmem:[%s1101 + $0x18] sm:$0xff]
        %v1105 = vld [vmem:[%s1101 + $0x20] sm:$0xff]
        %v1106 = vld [vmem:[%s1101 + $0x30] sm:$0xff]
        %v1107 = vld [vmem:[%s1101 + $0x38] sm:$0xff]
        %v1108 = vld [vmem:[%s1101 + $0x48] sm:$0xff]
        %v1109 = vld [vmem:[%s1101 + $0x50] sm:$0xff]
        %v1110 = vld [vmem:[%s1101 + $0x60] sm:$0xff]
        %v1111 = vld [vmem:[%s1101 + $0x68] sm:$0xff]
        %v1112 = vld [vmem:[%s1101 + $0x78] sm:$0xff]
        %v1113 = vld [vmem:[%s1101 + $0x80] sm:$0xff]
        %v1114 = vld [vmem:[%s1101 + $0x90] sm:$0xff]
        %v1115 = vld [vmem:[%s1101 + $0x98] sm:$0xff]
        %v1116 = vld [vmem:[%s1101 + $0xa8] sm:$0xff]
        %v1117 = vld [vmem:[%s1101 + $0xb0] sm:$0xff]
        %v1118 = vld [vmem:[%s1101 + $0xc0] sm:$0xff]
        %v1119 = vld [vmem:[%s1101 + $0xc8] sm:$0xff]
        %v1120 = vld [vmem:[%s1101 + $0xd8] sm:$0xff]
        %v1121 = vld [vmem:[%s1101 + $0xe0] sm:$0xff]
        %v1122 = vld [vmem:[%s1101 + $0xf0] sm:$0xff]
        %v1123 = vld [vmem:[%s1101 + $0xf8] sm:$0xff]
        %v1124 = vld [vmem:[%s1101 + $0x108] sm:$0xff]
        %v1125 = vld [vmem:[%s1101 + $0x110] sm:$0xff]
        %v1126 = vld [vmem:[%s1101 + $0x120] sm:$0xff]
        %v1127 = vld [vmem:[%s1101 + $0x128] sm:$0xff]
        %v1128 = vld [vmem:[%s1101 + $0x138] sm:$0xff]
        %v1129 = vld [vmem:[%s1101 + $0x140] sm:$0xff]
        %v1130 = vld [vmem:[%s1101 + $0x150] sm:$0xff]
        %v1131 = vld [vmem:[%s1101 + $0x158] sm:$0xff]
        %v1132 = vld [vmem:[%s1101 + $0x168] sm:$0xff]
        %v1133 = vld [vmem:[%s1101 + $0x170] sm:$0xff]
        %v1134 = vperm.slane %v513, 0
        %v1135 = vmul.f32 %v1102, %v1134
        %v1136 = vmul.f32 %v1103, %v1134
        %v1137 = vmul.f32 %v1104, %v1134
        %v1138 = vmul.f32 %v1105, %v1134
        %v1139 = vmul.f32 %v1106, %v1134
        %v1140 = vmul.f32 %v1107, %v1134
        %v1141 = vmul.f32 %v1108, %v1134
        %v1142 = vmul.f32 %v1109, %v1134
        %v1143 = vmul.f32 %v1110, %v1134
        %v1144 = vmul.f32 %v1111, %v1134
        %v1145 = vmul.f32 %v1112, %v1134
        %v1146 = vmul.f32 %v1113, %v1134
        %v1147 = vmul.f32 %v1114, %v1134
        %v1148 = vmul.f32 %v1115, %v1134
        %v1149 = vmul.f32 %v1116, %v1134
        %v1150 = vmul.f32 %v1117, %v1134
        %v1151 = vmul.f32 %v1118, %v1134
        %v1152 = vmul.f32 %v1119, %v1134
        %v1153 = vmul.f32 %v1120, %v1134
        %v1154 = vmul.f32 %v1121, %v1134
        %v1155 = vmul.f32 %v1122, %v1134
        %v1156 = vmul.f32 %v1123, %v1134
        %v1157 = vmul.f32 %v1124, %v1134
        %v1158 = vmul.f32 %v1125, %v1134
        %v1159 = vmul.f32 %v1126, %v1134
        %v1160 = vmul.f32 %v1127, %v1134
        %v1161 = vmul.f32 %v1128, %v1134
        %v1162 = vmul.f32 %v1129, %v1134
        %v1163 = vmul.f32 %v1130, %v1134
        %v1164 = vmul.f32 %v1131, %v1134
        %v1165 = vmul.f32 %v1132, %v1134
        %v1166 = vmul.f32 %v1133, %v1134
        %v1167 = vadd.f32 %v1068, %v1135
        %v1168 = vadd.f32 %v1069, %v1136
        %v1169 = vadd.f32 %v1070, %v1137
        %v1170 = vadd.f32 %v1071, %v1138
        %v1171 = vadd.f32 %v1072, %v1139
        %v1172 = vadd.f32 %v1073, %v1140
        %v1173 = vadd.f32 %v1074, %v1141
        %v1174 = vadd.f32 %v1075, %v1142
        %v1175 = vadd.f32 %v1076, %v1143
        %v1176 = vadd.f32 %v1077, %v1144
        %v1177 = vadd.f32 %v1078, %v1145
        %v1178 = vadd.f32 %v1079, %v1146
        %v1179 = vadd.f32 %v1080, %v1147
        %v1180 = vadd.f32 %v1081, %v1148
        %v1181 = vadd.f32 %v1082, %v1149
        %v1182 = vadd.f32 %v1083, %v1150
        %v1183 = vadd.f32 %v1084, %v1151
        %v1184 = vadd.f32 %v1085, %v1152
        %v1185 = vadd.f32 %v1086, %v1153
        %v1186 = vadd.f32 %v1087, %v1154
        %v1187 = vadd.f32 %v1088, %v1155
        %v1188 = vadd.f32 %v1089, %v1156
        %v1189 = vadd.f32 %v1090, %v1157
        %v1190 = vadd.f32 %v1091, %v1158
        %v1191 = vadd.f32 %v1092, %v1159
        %v1192 = vadd.f32 %v1093, %v1160
        %v1193 = vadd.f32 %v1094, %v1161
        %v1194 = vadd.f32 %v1095, %v1162
        %v1195 = vadd.f32 %v1096, %v1163
        %v1196 = vadd.f32 %v1097, %v1164
        %v1197 = vadd.f32 %v1098, %v1165
        %v1198 = vadd.f32 %v1099, %v1166
        %v1199 = vld [vmem:[%s1101 + $0x2] sm:$0xff]
        %v1200 = vld [vmem:[%s1101 + $0xa] sm:$0xff]
        %v1201 = vld [vmem:[%s1101 + $0x1a] sm:$0xff]
        %v1202 = vld [vmem:[%s1101 + $0x22] sm:$0xff]
        %v1203 = vld [vmem:[%s1101 + $0x32] sm:$0xff]
        %v1204 = vld [vmem:[%s1101 + $0x3a] sm:$0xff]
        %v1205 = vld [vmem:[%s1101 + $0x4a] sm:$0xff]
        %v1206 = vld [vmem:[%s1101 + $0x52] sm:$0xff]
        %v1207 = vld [vmem:[%s1101 + $0x62] sm:$0xff]
        %v1208 = vld [vmem:[%s1101 + $0x6a] sm:$0xff]
        %v1209 = vld [vmem:[%s1101 + $0x7a] sm:$0xff]
        %v1210 = vld [vmem:[%s1101 + $0x82] sm:$0xff]
        %v1211 = vld [vmem:[%s1101 + $0x92] sm:$0xff]
        %v1212 = vld [vmem:[%s1101 + $0x9a] sm:$0xff]
        %v1213 = vld [vmem:[%s1101 + $0xaa] sm:$0xff]
        %v1214 = vld [vmem:[%s1101 + $0xb2] sm:$0xff]
        %v1215 = vld [vmem:[%s1101 + $0xc2] sm:$0xff]
        %v1216 = vld [vmem:[%s1101 + $0xca] sm:$0xff]
        %v1217 = vld [vmem:[%s1101 + $0xda] sm:$0xff]
        %v1218 = vld [vmem:[%s1101 + $0xe2] sm:$0xff]
        %v1219 = vld [vmem:[%s1101 + $0xf2] sm:$0xff]
        %v1220 = vld [vmem:[%s1101 + $0xfa] sm:$0xff]
        %v1221 = vld [vmem:[%s1101 + $0x10a] sm:$0xff]
        %v1222 = vld [vmem:[%s1101 + $0x112] sm:$0xff]
        %v1223 = vld [vmem:[%s1101 + $0x122] sm:$0xff]
        %v1224 = vld [vmem:[%s1101 + $0x12a] sm:$0xff]
        %v1225 = vld [vmem:[%s1101 + $0x13a] sm:$0xff]
        %v1226 = vld [vmem:[%s1101 + $0x142] sm:$0xff]
        %v1227 = vld [vmem:[%s1101 + $0x152] sm:$0xff]
        %v1228 = vld [vmem:[%s1101 + $0x15a] sm:$0xff]
        %v1229 = vld [vmem:[%s1101 + $0x16a] sm:$0xff]
        %v1230 = vld [vmem:[%s1101 + $0x172] sm:$0xff]
        %v1231 = vperm.slane %v513, 1
        %v1232 = vmul.f32 %v1199, %v1231
        %v1233 = vmul.f32 %v1200, %v1231
        %v1234 = vmul.f32 %v1201, %v1231
        %v1235 = vmul.f32 %v1202, %v1231
        %v1236 = vmul.f32 %v1203, %v1231
        %v1237 = vmul.f32 %v1204, %v1231
        %v1238 = vmul.f32 %v1205, %v1231
        %v1239 = vmul.f32 %v1206, %v1231
        %v1240 = vmul.f32 %v1207, %v1231
        %v1241 = vmul.f32 %v1208, %v1231
        %v1242 = vmul.f32 %v1209, %v1231
        %v1243 = vmul.f32 %v1210, %v1231
        %v1244 = vmul.f32 %v1211, %v1231
        %v1245 = vmul.f32 %v1212, %v1231
        %v1246 = vmul.f32 %v1213, %v1231
        %v1247 = vmul.f32 %v1214, %v1231
        %v1248 = vmul.f32 %v1215, %v1231
        %v1249 = vmul.f32 %v1216, %v1231
        %v1250 = vmul.f32 %v1217, %v1231
        %v1251 = vmul.f32 %v1218, %v1231
        %v1252 = vmul.f32 %v1219, %v1231
        %v1253 = vmul.f32 %v1220, %v1231
        %v1254 = vmul.f32 %v1221, %v1231
        %v1255 = vmul.f32 %v1222, %v1231
        %v1256 = vmul.f32 %v1223, %v1231
        %v1257 = vmul.f32 %v1224, %v1231
        %v1258 = vmul.f32 %v1225, %v1231
        %v1259 = vmul.f32 %v1226, %v1231
        %v1260 = vmul.f32 %v1227, %v1231
        %v1261 = vmul.f32 %v1228, %v1231
        %v1262 = vmul.f32 %v1229, %v1231
        %v1263 = vmul.f32 %v1230, %v1231
        %v1264 = vadd.f32 %v1167, %v1232
        %v1265 = vadd.f32 %v1168, %v1233
        %v1266 = vadd.f32 %v1169, %v1234
        %v1267 = vadd.f32 %v1170, %v1235
        %v1268 = vadd.f32 %v1171, %v1236
        %v1269 = vadd.f32 %v1172, %v1237
        %v1270 = vadd.f32 %v1173, %v1238
        %v1271 = vadd.f32 %v1174, %v1239
        %v1272 = vadd.f32 %v1175, %v1240
        %v1273 = vadd.f32 %v1176, %v1241
        %v1274 = vadd.f32 %v1177, %v1242
        %v1275 = vadd.f32 %v1178, %v1243
        %v1276 = vadd.f32 %v1179, %v1244
        %v1277 = vadd.f32 %v1180, %v1245
        %v1278 = vadd.f32 %v1181, %v1246
        %v1279 = vadd.f32 %v1182, %v1247
        %v1280 = vadd.f32 %v1183, %v1248
        %v1281 = vadd.f32 %v1184, %v1249
        %v1282 = vadd.f32 %v1185, %v1250
        %v1283 = vadd.f32 %v1186, %v1251
        %v1284 = vadd.f32 %v1187, %v1252
        %v1285 = vadd.f32 %v1188, %v1253
        %v1286 = vadd.f32 %v1189, %v1254
        %v1287 = vadd.f32 %v1190, %v1255
        %v1288 = vadd.f32 %v1191, %v1256
        %v1289 = vadd.f32 %v1192, %v1257
        %v1290 = vadd.f32 %v1193, %v1258
        %v1291 = vadd.f32 %v1194, %v1259
        %v1292 = vadd.f32 %v1195, %v1260
        %v1293 = vadd.f32 %v1196, %v1261
        %v1294 = vadd.f32 %v1197, %v1262
        %v1295 = vadd.f32 %v1198, %v1263
        %v1296 = vld [vmem:[%s1101 + $0x4] sm:$0xff]
        %v1297 = vld [vmem:[%s1101 + $0xc] sm:$0xff]
        %v1298 = vld [vmem:[%s1101 + $0x1c] sm:$0xff]
        %v1299 = vld [vmem:[%s1101 + $0x24] sm:$0xff]
        %v1300 = vld [vmem:[%s1101 + $0x34] sm:$0xff]
        %v1301 = vld [vmem:[%s1101 + $0x3c] sm:$0xff]
        %v1302 = vld [vmem:[%s1101 + $0x4c] sm:$0xff]
        %v1303 = vld [vmem:[%s1101 + $0x54] sm:$0xff]
        %v1304 = vld [vmem:[%s1101 + $0x64] sm:$0xff]
        %v1305 = vld [vmem:[%s1101 + $0x6c] sm:$0xff]
        %v1306 = vld [vmem:[%s1101 + $0x7c] sm:$0xff]
        %v1307 = vld [vmem:[%s1101 + $0x84] sm:$0xff]
        %v1308 = vld [vmem:[%s1101 + $0x94] sm:$0xff]
        %v1309 = vld [vmem:[%s1101 + $0x9c] sm:$0xff]
        %v1310 = vld [vmem:[%s1101 + $0xac] sm:$0xff]
        %v1311 = vld [vmem:[%s1101 + $0xb4] sm:$0xff]
        %v1312 = vld [vmem:[%s1101 + $0xc4] sm:$0xff]
        %v1313 = vld [vmem:[%s1101 + $0xcc] sm:$0xff]
        %v1314 = vld [vmem:[%s1101 + $0xdc] sm:$0xff]
        %v1315 = vld [vmem:[%s1101 + $0xe4] sm:$0xff]
        %v1316 = vld [vmem:[%s1101 + $0xf4] sm:$0xff]
        %v1317 = vld [vmem:[%s1101 + $0xfc] sm:$0xff]
        %v1318 = vld [vmem:[%s1101 + $0x10c] sm:$0xff]
        %v1319 = vld [vmem:[%s1101 + $0x114] sm:$0xff]
        %v1320 = vld [vmem:[%s1101 + $0x124] sm:$0xff]
        %v1321 = vld [vmem:[%s1101 + $0x12c] sm:$0xff]
        %v1322 = vld [vmem:[%s1101 + $0x13c] sm:$0xff]
        %v1323 = vld [vmem:[%s1101 + $0x144] sm:$0xff]
        %v1324 = vld [vmem:[%s1101 + $0x154] sm:$0xff]
        %v1325 = vld [vmem:[%s1101 + $0x15c] sm:$0xff]
        %v1326 = vld [vmem:[%s1101 + $0x16c] sm:$0xff]
        %v1327 = vld [vmem:[%s1101 + $0x174] sm:$0xff]
        %v1328 = vperm.slane %v513, 2
        %v1329 = vmul.f32 %v1296, %v1328
        %v1330 = vmul.f32 %v1297, %v1328
        %v1331 = vmul.f32 %v1298, %v1328
        %v1332 = vmul.f32 %v1299, %v1328
        %v1333 = vmul.f32 %v1300, %v1328
        %v1334 = vmul.f32 %v1301, %v1328
        %v1335 = vmul.f32 %v1302, %v1328
        %v1336 = vmul.f32 %v1303, %v1328
        %v1337 = vmul.f32 %v1304, %v1328
        %v1338 = vmul.f32 %v1305, %v1328
        %v1339 = vmul.f32 %v1306, %v1328
        %v1340 = vmul.f32 %v1307, %v1328
        %v1341 = vmul.f32 %v1308, %v1328
        %v1342 = vmul.f32 %v1309, %v1328
        %v1343 = vmul.f32 %v1310, %v1328
        %v1344 = vmul.f32 %v1311, %v1328
        %v1345 = vmul.f32 %v1312, %v1328
        %v1346 = vmul.f32 %v1313, %v1328
        %v1347 = vmul.f32 %v1314, %v1328
        %v1348 = vmul.f32 %v1315, %v1328
        %v1349 = vmul.f32 %v1316, %v1328
        %v1350 = vmul.f32 %v1317, %v1328
        %v1351 = vmul.f32 %v1318, %v1328
        %v1352 = vmul.f32 %v1319, %v1328
        %v1353 = vmul.f32 %v1320, %v1328
        %v1354 = vmul.f32 %v1321, %v1328
        %v1355 = vmul.f32 %v1322, %v1328
        %v1356 = vmul.f32 %v1323, %v1328
        %v1357 = vmul.f32 %v1324, %v1328
        %v1358 = vmul.f32 %v1325, %v1328
        %v1359 = vmul.f32 %v1326, %v1328
        %v1360 = vmul.f32 %v1327, %v1328
        %v1361 = vadd.f32 %v1264, %v1329
        %v1362 = vadd.f32 %v1265, %v1330
        %v1363 = vadd.f32 %v1266, %v1331
        %v1364 = vadd.f32 %v1267, %v1332
        %v1365 = vadd.f32 %v1268, %v1333
        %v1366 = vadd.f32 %v1269, %v1334
        %v1367 = vadd.f32 %v1270, %v1335
        %v1368 = vadd.f32 %v1271, %v1336
        %v1369 = vadd.f32 %v1272, %v1337
        %v1370 = vadd.f32 %v1273, %v1338
        %v1371 = vadd.f32 %v1274, %v1339
        %v1372 = vadd.f32 %v1275, %v1340
        %v1373 = vadd.f32 %v1276, %v1341
        %v1374 = vadd.f32 %v1277, %v1342
        %v1375 = vadd.f32 %v1278, %v1343
        %v1376 = vadd.f32 %v1279, %v1344
        %v1377 = vadd.f32 %v1280, %v1345
        %v1378 = vadd.f32 %v1281, %v1346
        %v1379 = vadd.f32 %v1282, %v1347
        %v1380 = vadd.f32 %v1283, %v1348
        %v1381 = vadd.f32 %v1284, %v1349
        %v1382 = vadd.f32 %v1285, %v1350
        %v1383 = vadd.f32 %v1286, %v1351
        %v1384 = vadd.f32 %v1287, %v1352
        %v1385 = vadd.f32 %v1288, %v1353
        %v1386 = vadd.f32 %v1289, %v1354
        %v1387 = vadd.f32 %v1290, %v1355
        %v1388 = vadd.f32 %v1291, %v1356
        %v1389 = vadd.f32 %v1292, %v1357
        %v1390 = vadd.f32 %v1293, %v1358
        %v1391 = vadd.f32 %v1294, %v1359
        %v1392 = vadd.f32 %v1295, %v1360
        %v1393 = vld [vmem:[%s2] sm:$0xff]
        %v1394 = vld [vmem:[%s2 + $0x8] sm:$0xff]
        %v1395 = vld [vmem:[%s2 + $0x10] sm:$0xff]
        %v1396 = vld [vmem:[%s2 + $0x18] sm:$0xff]
        %v1397 = vld [vmem:[%s2 + $0x20] sm:$0xff]
        %v1398 = vld [vmem:[%s2 + $0x28] sm:$0xff]
        %v1399 = vld [vmem:[%s2 + $0x30] sm:$0xff]
        %v1400 = vld [vmem:[%s2 + $0x38] sm:$0xff]
        %v1401 = vld [vmem:[%s2 + $0x40] sm:$0xff]
        %v1402 = vld [vmem:[%s2 + $0x48] sm:$0xff]
        %v1403 = vld [vmem:[%s2 + $0x50] sm:$0xff]
        %v1404 = vld [vmem:[%s2 + $0x58] sm:$0xff]
        %v1405 = vld [vmem:[%s2 + $0x60] sm:$0xff]
        %v1406 = vld [vmem:[%s2 + $0x68] sm:$0xff]
        %v1407 = vld [vmem:[%s2 + $0x70] sm:$0xff]
        %v1408 = vld [vmem:[%s2 + $0x78] sm:$0xff]
        %v1409 = vld [vmem:[%s3] sm:$0x1]
        %v1411 = vperm.slane %v1409, 0
        %1413 = vmatpush.msra.mxu0 %v1408
        %1414 = vmatpush.msra.mxu0 %v1407
        %1415 = vmatpush.msra.mxu0 %v1406
        %1416 = vmatpush.msra.mxu0 %v1405
        %1417 = vmatpush.msra.mxu0 %v1404
        %1418 = vmatpush.msra.mxu0 %v1403
        %1419 = vmatpush.msra.mxu0 %v1402
        %1420 = vmatpush.msra.mxu0 %v1401
        %1421 = vmatpush.msra.mxu0 %v1400
        %1422 = vmatpush.msra.mxu0 %v1399
        %1423 = vmatpush.msra.mxu0 %v1398
        %1424 = vmatpush.msra.mxu0 %v1397
        %1425 = vmatpush.msra.mxu0 %v1396
        %1426 = vmatpush.msra.mxu0 %v1395
        %1427 = vmatpush.msra.mxu0 %v1394
        %1428 = vmatpush.msra.mxu0 %v1393
        %1429 = vmatmul.f32.gmra.mxu0 %v1361
        %v1430 = vpop.f32.mrf.mxu0
        %v1431 = vadd.f32 %v1411, %v1430
        %1432 = vmatmul.f32.gmra.mxu0 %v1362
        %v1433 = vpop.f32.mrf.mxu0
        %v1434 = vadd.f32 %v1411, %v1433
        %1435 = vmatmul.f32.gmra.mxu0 %v1363
        %v1436 = vpop.f32.mrf.mxu0
        %v1437 = vadd.f32 %v1411, %v1436
        %1438 = vmatmul.f32.gmra.mxu0 %v1364
        %v1439 = vpop.f32.mrf.mxu0
        %v1440 = vadd.f32 %v1411, %v1439
        %1441 = vmatmul.f32.gmra.mxu0 %v1365
        %v1442 = vpop.f32.mrf.mxu0
        %v1443 = vadd.f32 %v1411, %v1442
        %1444 = vmatmul.f32.gmra.mxu0 %v1366
        %v1445 = vpop.f32.mrf.mxu0
        %v1446 = vadd.f32 %v1411, %v1445
        %1447 = vmatmul.f32.gmra.mxu0 %v1367
        %v1448 = vpop.f32.mrf.mxu0
        %v1449 = vadd.f32 %v1411, %v1448
        %1450 = vmatmul.f32.gmra.mxu0 %v1368
        %v1451 = vpop.f32.mrf.mxu0
        %v1452 = vadd.f32 %v1411, %v1451
        %1453 = vmatmul.f32.gmra.mxu0 %v1369
        %v1454 = vpop.f32.mrf.mxu0
        %v1455 = vadd.f32 %v1411, %v1454
        %1456 = vmatmul.f32.gmra.mxu0 %v1370
        %v1457 = vpop.f32.mrf.mxu0
        %v1458 = vadd.f32 %v1411, %v1457
        %1459 = vmatmul.f32.gmra.mxu0 %v1371
        %v1460 = vpop.f32.mrf.mxu0
        %v1461 = vadd.f32 %v1411, %v1460
        %1462 = vmatmul.f32.gmra.mxu0 %v1372
        %v1463 = vpop.f32.mrf.mxu0
        %v1464 = vadd.f32 %v1411, %v1463
        %1465 = vmatmul.f32.gmra.mxu0 %v1373
        %v1466 = vpop.f32.mrf.mxu0
        %v1467 = vadd.f32 %v1411, %v1466
        %1468 = vmatmul.f32.gmra.mxu0 %v1374
        %v1469 = vpop.f32.mrf.mxu0
        %v1470 = vadd.f32 %v1411, %v1469
        %1471 = vmatmul.f32.gmra.mxu0 %v1375
        %v1472 = vpop.f32.mrf.mxu0
        %v1473 = vadd.f32 %v1411, %v1472
        %1474 = vmatmul.f32.gmra.mxu0 %v1376
        %v1475 = vpop.f32.mrf.mxu0
        %v1476 = vadd.f32 %v1411, %v1475
        %1477 = vmatmul.f32.gmra.mxu0 %v1377
        %v1478 = vpop.f32.mrf.mxu0
        %v1479 = vadd.f32 %v1411, %v1478
        %1480 = vmatmul.f32.gmra.mxu0 %v1378
        %v1481 = vpop.f32.mrf.mxu0
        %v1482 = vadd.f32 %v1411, %v1481
        %1483 = vmatmul.f32.gmra.mxu0 %v1379
        %v1484 = vpop.f32.mrf.mxu0
        %v1485 = vadd.f32 %v1411, %v1484
        %1486 = vmatmul.f32.gmra.mxu0 %v1380
        %v1487 = vpop.f32.mrf.mxu0
        %v1488 = vadd.f32 %v1411, %v1487
        %1489 = vmatmul.f32.gmra.mxu0 %v1381
        %v1490 = vpop.f32.mrf.mxu0
        %v1491 = vadd.f32 %v1411, %v1490
        %1492 = vmatmul.f32.gmra.mxu0 %v1382
        %v1493 = vpop.f32.mrf.mxu0
        %v1494 = vadd.f32 %v1411, %v1493
        %1495 = vmatmul.f32.gmra.mxu0 %v1383
        %v1496 = vpop.f32.mrf.mxu0
        %v1497 = vadd.f32 %v1411, %v1496
        %1498 = vmatmul.f32.gmra.mxu0 %v1384
        %v1499 = vpop.f32.mrf.mxu0
        %v1500 = vadd.f32 %v1411, %v1499
        %1501 = vmatmul.f32.gmra.mxu0 %v1385
        %v1502 = vpop.f32.mrf.mxu0
        %v1503 = vadd.f32 %v1411, %v1502
        %1504 = vmatmul.f32.gmra.mxu0 %v1386
        %v1505 = vpop.f32.mrf.mxu0
        %v1506 = vadd.f32 %v1411, %v1505
        %1507 = vmatmul.f32.gmra.mxu0 %v1387
        %v1508 = vpop.f32.mrf.mxu0
        %v1509 = vadd.f32 %v1411, %v1508
        %1510 = vmatmul.f32.gmra.mxu0 %v1388
        %v1511 = vpop.f32.mrf.mxu0
        %v1512 = vadd.f32 %v1411, %v1511
        %1513 = vmatmul.f32.gmra.mxu0 %v1389
        %v1514 = vpop.f32.mrf.mxu0
        %v1515 = vadd.f32 %v1411, %v1514
        %1516 = vmatmul.f32.gmra.mxu0 %v1390
        %v1517 = vpop.f32.mrf.mxu0
        %v1518 = vadd.f32 %v1411, %v1517
        %1519 = vmatmul.f32.gmra.mxu0 %v1391
        %v1520 = vpop.f32.mrf.mxu0
        %v1521 = vadd.f32 %v1411, %v1520
        %1522 = vmatmul.f32.gmra.mxu0 %v1392
        %v1523 = vpop.f32.mrf.mxu0
        %v1524 = vadd.f32 %v1411, %v1523
        %1525 = vdwg.mxu0
        %1526 = vst [vmem:[%s163] sm:$0xff] %v1431
        %1527 = vst [vmem:[%s163 + $0x8] sm:$0xff] %v1434
        %1528 = vst [vmem:[%s163 + $0x10] sm:$0xff] %v1437
        %1529 = vst [vmem:[%s163 + $0x18] sm:$0xff] %v1440
        %1530 = vst [vmem:[%s163 + $0x20] sm:$0xff] %v1443
        %1531 = vst [vmem:[%s163 + $0x28] sm:$0xff] %v1446
        %1532 = vst [vmem:[%s163 + $0x30] sm:$0xff] %v1449
        %1533 = vst [vmem:[%s163 + $0x38] sm:$0xff] %v1452
        %1534 = vst [vmem:[%s163 + $0x40] sm:$0xff] %v1455
        %1535 = vst [vmem:[%s163 + $0x48] sm:$0xff] %v1458
        %1536 = vst [vmem:[%s163 + $0x50] sm:$0xff] %v1461
        %1537 = vst [vmem:[%s163 + $0x58] sm:$0xff] %v1464
        %1538 = vst [vmem:[%s163 + $0x60] sm:$0xff] %v1467
        %1539 = vst [vmem:[%s163 + $0x68] sm:$0xff] %v1470
        %1540 = vst [vmem:[%s163 + $0x70] sm:$0xff] %v1473
        %1541 = vst [vmem:[%s163 + $0x78] sm:$0xff] %v1476
        %1542 = vst [vmem:[%s163 + $0x80] sm:$0xff] %v1479
        %1543 = vst [vmem:[%s163 + $0x88] sm:$0xff] %v1482
        %1544 = vst [vmem:[%s163 + $0x90] sm:$0xff] %v1485
        %1545 = vst [vmem:[%s163 + $0x98] sm:$0xff] %v1488
        %1546 = vst [vmem:[%s163 + $0xa0] sm:$0xff] %v1491
        %1547 = vst [vmem:[%s163 + $0xa8] sm:$0xff] %v1494
        %1548 = vst [vmem:[%s163 + $0xb0] sm:$0xff] %v1497
        %1549 = vst [vmem:[%s163 + $0xb8] sm:$0xff] %v1500
        %1550 = vst [vmem:[%s163 + $0xc0] sm:$0xff] %v1503
        %1551 = vst [vmem:[%s163 + $0xc8] sm:$0xff] %v1506
        %1552 = vst [vmem:[%s163 + $0xd0] sm:$0xff] %v1509
        %1553 = vst [vmem:[%s163 + $0xd8] sm:$0xff] %v1512
        %1554 = vst [vmem:[%s163 + $0xe0] sm:$0xff] %v1515
        %1555 = vst [vmem:[%s163 + $0xe8] sm:$0xff] %v1518
        %1556 = vst [vmem:[%s163 + $0xf0] sm:$0xff] %v1521
        %1557 = vst [vmem:[%s163 + $0xf8] sm:$0xff] %v1524
        %s1558 = sand.u32 %s103, 1
        %s1559 = scalar_lea.sflag [#allocation5], %s1558
        %s1560 = sand.u32 %s103, 1
        %s1561 = smul.addr %s1560, 256
        %s1562 = scalar_lea.vmem [#allocation4], %s1561
        // Predicated region
        $region85: #{tpu_custom_call.1} parent=31 // pred_check
          %p1563 = pneg %p113
        $region86: #{tpu_custom_call.1} parent=31 // pred_check_branch
          %1565 = sbr.rel (%p1563) target = $region88
        $region87: #{tpu_custom_call.1} parent=31 // pred_region
          %s1566 = smul.u32 16, %s23
          %1568 = vsyncadd %s1559, 0
          %s1569 = smul.addr %s1566, 2
          %s1570 = smul.addr %s22, 32
          %s1571 = sadd.s32 %s1569, %s1570
          %s1572 = smul.addr %s1571, 8
          %s1573 = scalar_lea.hbm %s4, %s1572
          %s1574 = sshll.u32 %s1562, 4
          %s1575 = int_to_ptr.vmem [resolvable:$true] %s1574
          %s1576 = sshll.u32 %s1573, 4
          %s1577 = int_to_ptr.hbm [resolvable:$true] %s1576
          %1582 = dma.vmem_to_hbm [thread:$0]  %s1575, 4096, %s1577, %s1559, 128, 128, 8
        $region88: #{tpu_custom_call.1} parent=31 // pred_fallthru
          _
      $region32: #{tpu_custom_call.1} parent=5 // pred_fallthru
        _
      %p1583 = scmp.le.s32.totalorder 2, %s13
      // Predicated region
      $region89: #{tpu_custom_call.1} parent=5 // pred_check
        %p1584 = pneg %p1583
      $region90: #{tpu_custom_call.1} parent=5 // pred_check_branch
        %1586 = sbr.rel (%p1584) target = $region92
      $region91: #{tpu_custom_call.1} parent=5 // pred_region
        %s1587 = ssub.s32 %s13, 2
        // Predicated region
        $region93: #{tpu_custom_call.1} parent=91 // pred_check
          %p1588 = pneg %p119
        $region94: #{tpu_custom_call.1} parent=91 // pred_check_branch
          %1590 = sbr.rel (%p1588) target = $region96
        $region95: #{tpu_custom_call.1} parent=91 // pred_region
          %s1591 = sand.u32 %s104, 1
          %s1592 = scalar_lea.sflag [#allocation5], %s1591
          %s1593 = sand.u32 %s104, 1
          %s1594 = smul.addr %s1593, 256
          %s1595 = scalar_lea.vmem [#allocation4], %s1594
          %1597 = dma.done %s1592, 4096
        $region96: #{tpu_custom_call.1} parent=91 // pred_fallthru
          _
      $region92: #{tpu_custom_call.1} parent=5 // pred_fallthru
        _
    $region6: #{tpu_custom_call.1} parent=1 // loop_footer
      %s17 = sadd.s32 1, %s13
    $region7: #{tpu_custom_call.1} parent=1 // loop_footer_branch
      %12 = sbr.rel target = $region3
    $region8: #{tpu_custom_call.1} parent=1 // loop_exit
      _
    %1598 = vsyncpa [#allocation5], 1
    %s1599 = scalar_lea.sflag [#allocation5], 1
    %1600 = vsyncpa %s1599, 1
  %1601 = vsyncmov [#allocation3]
  %s1602 = vpop.sfrf %1601
  %p1603 = scmp.eq.s32.totalorder %s1602, 0
  %p1604 = pneg %p1603
  %1606 = shalt.err (%p1604)
  %s1607 = scalar_lea.sflag [#allocation3], 1
  %1608 = vsyncmov %s1607
  %s1609 = vpop.sfrf %1608
  %p1610 = scmp.eq.s32.totalorder %s1609, 0
  %p1611 = pneg %p1610
  %1613 = shalt.err (%p1611)

</llo_original>
